<compile_context>
chip_gen: v7x
topology: tpu7x:2x2x1
jax: 0.10.0
libtpu: 0.0.40
codegen_flags: <defaults>
</compile_context>

<pallas_src>
import functools

import jax
import jax.numpy as jnp
from jax.experimental import pallas as pl
from jax.experimental.pallas import tpu as pltpu

INPUT_SIZE = 657
HIDDEN_SIZES = (256, 128, 64, 32)
OUTPUT_SIZE = 6  # len(main_actions)

LANE = 128
SUBLANE = 8


def _round_up(n, m):
    return ((n + m - 1) // m) * m


# Lane-aligned (padded) layer widths: 768 -> 256 -> 128 -> 128 -> 128 -> 128
PADDED_DIMS = tuple(
    _round_up(d, LANE) for d in (INPUT_SIZE,) + HIDDEN_SIZES + (OUTPUT_SIZE,)
)


def dqn_mlp_kernel(x_ref,
                   w1_ref, b1_ref,
                   w2_ref, b2_ref,
                   w3_ref, b3_ref,
                   w4_ref, b4_ref,
                   w5_ref, b5_ref,
                   o_ref):
    """Fused 5-layer MLP forward for one batch tile.

    All (zero-padded, lane-aligned) weights are VMEM-resident (~560 KB in bf16).
    Matmuls run in bf16 on the MXU with f32 accumulation; bias-add / ReLU in
    f32 on the VPU.
    """

    def layer(h, w_ref, b_ref, relu):
        acc = jnp.dot(h, w_ref[...], preferred_element_type=jnp.float32)
        acc = acc + b_ref[...]
        if relu:
            acc = jnp.maximum(acc, 0.0)
        return acc

    h = x_ref[...]                                         # bf16 (block_b, 768)
    h = layer(h, w1_ref, b1_ref, True).astype(jnp.bfloat16)
    h = layer(h, w2_ref, b2_ref, True).astype(jnp.bfloat16)
    h = layer(h, w3_ref, b3_ref, True).astype(jnp.bfloat16)
    h = layer(h, w4_ref, b4_ref, True).astype(jnp.bfloat16)
    logits = layer(h, w5_ref, b5_ref, False)               # f32 (block_b, 128)
    o_ref[...] = logits.astype(o_ref.dtype)


def _pad_params(params):
    """Zero-pad weights/biases to PADDED_DIMS; weights -> bf16, biases stay f32."""
    padded = []
    for i, (w, b) in enumerate(params):
        in_p, out_p = PADDED_DIMS[i], PADDED_DIMS[i + 1]
        wp = jnp.pad(w, ((0, in_p - w.shape[0]), (0, out_p - w.shape[1])))
        bp = jnp.pad(b, ((0, 0), (0, out_p - b.shape[1])))
        padded.append((wp.astype(jnp.bfloat16), bp.astype(jnp.float32)))
    return padded


def _choose_block_b(batch_sublane_padded, max_tile):
    """Batch tile: big enough to feed the MXU, >=2 grid steps when possible."""
    block_b = min(max_tile, batch_sublane_padded)
    # v7x has 2 TensorCores: give the "parallel" grid axis >= 2 steps when the
    # batch is large enough to split.
    if batch_sublane_padded // block_b < 2 and batch_sublane_padded >= 2 * SUBLANE:
        block_b = _round_up(batch_sublane_padded // 2, SUBLANE)
    return block_b


@functools.partial(jax.jit, static_argnames=("max_tile",))
def dqn_forward(x, params, *, max_tile=256):
    """x: (B, 657) float32 -> (B, 6) float32 Q-values."""
    B, F = x.shape
    assert F == INPUT_SIZE

    in_pad = PADDED_DIMS[0]    # 768
    out_pad = PADDED_DIMS[-1]  # 128

    batch_sub = _round_up(B, SUBLANE)
    block_b = _choose_block_b(batch_sub, max_tile)
    batch_padded = _round_up(B, block_b)

    # Pad batch + feature dims with zeros; cast activations to bf16 for the MXU.
    x_p = jnp.pad(x, ((0, batch_padded - B), (0, in_pad - F))).astype(jnp.bfloat16)
    padded_params = _pad_params(params)

    grid = (batch_padded // block_b,)

    in_specs = [pl.BlockSpec((block_b, in_pad), lambda i: (i, 0))]
    flat_params = []
    for w, b in padded_params:
        in_specs.append(pl.BlockSpec(w.shape, lambda i: (0, 0)))
        in_specs.append(pl.BlockSpec(b.shape, lambda i: (0, 0)))
        flat_params.extend([w, b])

    out_spec = pl.BlockSpec((block_b, out_pad), lambda i: (i, 0))

    out_padded = pl.pallas_call(
        dqn_mlp_kernel,
        out_shape=jax.ShapeDtypeStruct((batch_padded, out_pad), jnp.float32),
        grid_spec=pltpu.PrefetchScalarGridSpec(
            num_scalar_prefetch=0,
            grid=grid,
            in_specs=in_specs,
            out_specs=out_spec,
        ),
        compiler_params=pltpu.CompilerParams(
            dimension_semantics=("parallel",),
        ),
    )(x_p, *flat_params)

    # Lane-dense store in-kernel; slice back to the true (B, 6) outside.
    return out_padded[:B, :OUTPUT_SIZE]


def init_params(key):
    """Deterministic PyTorch-nn.Linear-style init: U(-1/sqrt(fan_in), 1/sqrt(fan_in))."""
    dims = (INPUT_SIZE,) + HIDDEN_SIZES + (OUTPUT_SIZE,)
    params = []
    for i in range(len(dims) - 1):
        fan_in, fan_out = dims[i], dims[i + 1]
        key, kw, kb = jax.random.split(key, 3)
        bound = 1.0 / jnp.sqrt(jnp.float32(fan_in))
        # Stored as (in, out) so kernel computes x @ W (== x @ W_torch^T).
        w = jax.random.uniform(kw, (fan_in, fan_out), jnp.float32, -bound, bound)
        b = jax.random.uniform(kb, (1, fan_out), jnp.float32, -bound, bound)
        params.append((w, b))
    return tuple(params)


def reference_forward(x, params):
    """Pure-JAX f32 reference of the PyTorch forward."""
    h = x
    for i, (w, b) in enumerate(params):
        h = h @ w + b
        if i < len(params) - 1:
            h = jnp.maximum(h, 0.0)
    return h


# TODO(synk): replay()/Adam optimizer step, epsilon-greedy action selection and
# experience-buffer management are training/host-side logic, not part of the
# forward pass, and are intentionally not expressed as Pallas kernels.

if __name__ == "__main__":
    key = jax.random.PRNGKey(0)
    pkey, xkey, xkey1 = jax.random.split(key, 3)

    params = init_params(pkey)

    # Batch matching the module's replay batch_size=64.
    B = 64
    x = jax.random.normal(xkey, (B, INPUT_SIZE), jnp.float32)
    q_values = jax.block_until_ready(dqn_forward(x, params))

    q_ref = reference_forward(x, params)
    assert q_values.shape == (B, OUTPUT_SIZE)
    # bf16 matmul inputs with f32 accumulation -> loosened tolerance vs f32 ref.
    assert jnp.allclose(q_values, q_ref, atol=5e-2, rtol=5e-2), (
        float(jnp.max(jnp.abs(q_values - q_ref))))

    # Single-state path (choose_action uses batch=1); exercises batch padding.
    x1 = jax.random.normal(xkey1, (1, INPUT_SIZE), jnp.float32)
    q1 = jax.block_until_ready(dqn_forward(x1, params))
    q1_ref = reference_forward(x1, params)
    assert q1.shape == (1, OUTPUT_SIZE)
    assert jnp.allclose(q1, q1_ref, atol=5e-2, rtol=5e-2), (
        float(jnp.max(jnp.abs(q1 - q1_ref))))

    print("KERNEL_OK")
</pallas_src>

<mosaic_0001>
module attributes {stable_mosaic.version = 11 : i64} {
  func.func @dqn_mlp_kernel(%arg0: i32, %arg1: memref<32x768xbf16, #tpu.memory_space<vmem>>, %arg2: memref<768x256xbf16, #tpu.memory_space<vmem>>, %arg3: memref<1x256xf32, #tpu.memory_space<vmem>>, %arg4: memref<256x128xbf16, #tpu.memory_space<vmem>>, %arg5: memref<1x128xf32, #tpu.memory_space<vmem>>, %arg6: memref<128x128xbf16, #tpu.memory_space<vmem>>, %arg7: memref<1x128xf32, #tpu.memory_space<vmem>>, %arg8: memref<128x128xbf16, #tpu.memory_space<vmem>>, %arg9: memref<1x128xf32, #tpu.memory_space<vmem>>, %arg10: memref<128x128xbf16, #tpu.memory_space<vmem>>, %arg11: memref<1x128xf32, #tpu.memory_space<vmem>>, %arg12: memref<32x128xf32, #tpu.memory_space<vmem>>) attributes {dimension_semantics = [#tpu.dimension_semantics<parallel>], iteration_bounds = array<i64: 2>, scalar_prefetch = 0 : i64, scratch_operands = 0 : i64, tpu.core_type = #tpu.core_type<tc>, window_params = [{transform_indices = @transform_0, window_bounds = array<i64: 32, 768>}, {pipeline_mode = #tpu.pipeline_mode<synchronous>, transform_indices = @transform_1, window_bounds = array<i64: 768, 256>}, {pipeline_mode = #tpu.pipeline_mode<synchronous>, transform_indices = @transform_2, window_bounds = array<i64: 1, 256>}, {pipeline_mode = #tpu.pipeline_mode<synchronous>, transform_indices = @transform_3, window_bounds = array<i64: 256, 128>}, {pipeline_mode = #tpu.pipeline_mode<synchronous>, transform_indices = @transform_4, window_bounds = array<i64: 1, 128>}, {pipeline_mode = #tpu.pipeline_mode<synchronous>, transform_indices = @transform_5, window_bounds = array<i64: 128, 128>}, {pipeline_mode = #tpu.pipeline_mode<synchronous>, transform_indices = @transform_6, window_bounds = array<i64: 1, 128>}, {pipeline_mode = #tpu.pipeline_mode<synchronous>, transform_indices = @transform_7, window_bounds = array<i64: 128, 128>}, {pipeline_mode = #tpu.pipeline_mode<synchronous>, transform_indices = @transform_8, window_bounds = array<i64: 1, 128>}, {pipeline_mode = #tpu.pipeline_mode<synchronous>, transform_indices = @transform_9, window_bounds = array<i64: 128, 128>}, {pipeline_mode = #tpu.pipeline_mode<synchronous>, transform_indices = @transform_10, window_bounds = array<i64: 1, 128>}, {transform_indices = @transform_11, window_bounds = array<i64: 32, 128>}]} {
    %c0 = arith.constant 0 : index
    %c0_0 = arith.constant 0 : index
    %0 = vector.load %arg1[%c0, %c0_0] : memref<32x768xbf16, #tpu.memory_space<vmem>>, vector<32x768xbf16>
    %c0_1 = arith.constant 0 : index
    %c0_2 = arith.constant 0 : index
    %1 = vector.load %arg2[%c0_1, %c0_2] : memref<768x256xbf16, #tpu.memory_space<vmem>>, vector<768x256xbf16>
    %cst = arith.constant dense<0.000000e+00> : vector<32x256xf32>
    %2 = tpu.matmul %0, %1, %cst {dimension_numbers = #tpu.dot_dimension_numbers<[1], [0], [0], [1], [0, 0, 1, 1], [], []>} : vector<32x768xbf16>, vector<768x256xbf16>, vector<32x256xf32> -> vector<32x256xf32>
    %c0_3 = arith.constant 0 : index
    %c0_4 = arith.constant 0 : index
    %3 = vector.load %arg3[%c0_3, %c0_4] : memref<1x256xf32, #tpu.memory_space<vmem>>, vector<1x256xf32>
    %4 = vector.broadcast %3 : vector<1x256xf32> to vector<32x256xf32>
    %5 = arith.addf %2, %4 : vector<32x256xf32>
    %cst_5 = arith.constant 0.000000e+00 : f32
    %6 = vector.broadcast %cst_5 : f32 to vector<32x256xf32>
    %7 = arith.maximumf %5, %6 : vector<32x256xf32>
    %8 = arith.truncf %7 : vector<32x256xf32> to vector<32x256xbf16>
    %c0_6 = arith.constant 0 : index
    %c0_7 = arith.constant 0 : index
    %9 = vector.load %arg4[%c0_6, %c0_7] : memref<256x128xbf16, #tpu.memory_space<vmem>>, vector<256x128xbf16>
    %cst_8 = arith.constant dense<0.000000e+00> : vector<32x128xf32>
    %10 = tpu.matmul %8, %9, %cst_8 {dimension_numbers = #tpu.dot_dimension_numbers<[1], [0], [0], [1], [0, 0, 1, 1], [], []>} : vector<32x256xbf16>, vector<256x128xbf16>, vector<32x128xf32> -> vector<32x128xf32>
    %c0_9 = arith.constant 0 : index
    %c0_10 = arith.constant 0 : index
    %11 = vector.load %arg5[%c0_9, %c0_10] : memref<1x128xf32, #tpu.memory_space<vmem>>, vector<1x128xf32>
    %12 = vector.broadcast %11 : vector<1x128xf32> to vector<32x128xf32>
    %13 = arith.addf %10, %12 : vector<32x128xf32>
    %cst_11 = arith.constant 0.000000e+00 : f32
    %14 = vector.broadcast %cst_11 : f32 to vector<32x128xf32>
    %15 = arith.maximumf %13, %14 : vector<32x128xf32>
    %16 = arith.truncf %15 : vector<32x128xf32> to vector<32x128xbf16>
    %c0_12 = arith.constant 0 : index
    %c0_13 = arith.constant 0 : index
    %17 = vector.load %arg6[%c0_12, %c0_13] : memref<128x128xbf16, #tpu.memory_space<vmem>>, vector<128x128xbf16>
    %cst_14 = arith.constant dense<0.000000e+00> : vector<32x128xf32>
    %18 = tpu.matmul %16, %17, %cst_14 {dimension_numbers = #tpu.dot_dimension_numbers<[1], [0], [0], [1], [0, 0, 1, 1], [], []>} : vector<32x128xbf16>, vector<128x128xbf16>, vector<32x128xf32> -> vector<32x128xf32>
    %c0_15 = arith.constant 0 : index
    %c0_16 = arith.constant 0 : index
    %19 = vector.load %arg7[%c0_15, %c0_16] : memref<1x128xf32, #tpu.memory_space<vmem>>, vector<1x128xf32>
    %20 = vector.broadcast %19 : vector<1x128xf32> to vector<32x128xf32>
    %21 = arith.addf %18, %20 : vector<32x128xf32>
    %cst_17 = arith.constant 0.000000e+00 : f32
    %22 = vector.broadcast %cst_17 : f32 to vector<32x128xf32>
    %23 = arith.maximumf %21, %22 : vector<32x128xf32>
    %24 = arith.truncf %23 : vector<32x128xf32> to vector<32x128xbf16>
    %c0_18 = arith.constant 0 : index
    %c0_19 = arith.constant 0 : index
    %25 = vector.load %arg8[%c0_18, %c0_19] : memref<128x128xbf16, #tpu.memory_space<vmem>>, vector<128x128xbf16>
    %cst_20 = arith.constant dense<0.000000e+00> : vector<32x128xf32>
    %26 = tpu.matmul %24, %25, %cst_20 {dimension_numbers = #tpu.dot_dimension_numbers<[1], [0], [0], [1], [0, 0, 1, 1], [], []>} : vector<32x128xbf16>, vector<128x128xbf16>, vector<32x128xf32> -> vector<32x128xf32>
    %c0_21 = arith.constant 0 : index
    %c0_22 = arith.constant 0 : index
    %27 = vector.load %arg9[%c0_21, %c0_22] : memref<1x128xf32, #tpu.memory_space<vmem>>, vector<1x128xf32>
    %28 = vector.broadcast %27 : vector<1x128xf32> to vector<32x128xf32>
    %29 = arith.addf %26, %28 : vector<32x128xf32>
    %cst_23 = arith.constant 0.000000e+00 : f32
    %30 = vector.broadcast %cst_23 : f32 to vector<32x128xf32>
    %31 = arith.maximumf %29, %30 : vector<32x128xf32>
    %32 = arith.truncf %31 : vector<32x128xf32> to vector<32x128xbf16>
    %c0_24 = arith.constant 0 : index
    %c0_25 = arith.constant 0 : index
    %33 = vector.load %arg10[%c0_24, %c0_25] : memref<128x128xbf16, #tpu.memory_space<vmem>>, vector<128x128xbf16>
    %cst_26 = arith.constant dense<0.000000e+00> : vector<32x128xf32>
    %34 = tpu.matmul %32, %33, %cst_26 {dimension_numbers = #tpu.dot_dimension_numbers<[1], [0], [0], [1], [0, 0, 1, 1], [], []>} : vector<32x128xbf16>, vector<128x128xbf16>, vector<32x128xf32> -> vector<32x128xf32>
    %c0_27 = arith.constant 0 : index
    %c0_28 = arith.constant 0 : index
    %35 = vector.load %arg11[%c0_27, %c0_28] : memref<1x128xf32, #tpu.memory_space<vmem>>, vector<1x128xf32>
    %36 = vector.broadcast %35 : vector<1x128xf32> to vector<32x128xf32>
    %37 = arith.addf %34, %36 : vector<32x128xf32>
    %c0_29 = arith.constant 0 : index
    %c0_30 = arith.constant 0 : index
    %38 = vector.load %arg12[%c0_29, %c0_30] : memref<32x128xf32, #tpu.memory_space<vmem>>, vector<32x128xf32>
    tpu.vector_store %arg12[%c0_29, %c0_30], %37 {strides = array<i32>} : memref<32x128xf32, #tpu.memory_space<vmem>>, vector<32x128xf32>,
    return
  }
  func.func @transform_0(%arg0: i32) -> (i32, i32) {
    %c0_i32 = arith.constant 0 : i32
    %c0_i32_0 = arith.constant 0 : i32
    return %arg0, %c0_i32 : i32, i32
  }
  func.func @transform_1(%arg0: i32) -> (i32, i32) {
    %c0_i32 = arith.constant 0 : i32
    %c0_i32_0 = arith.constant 0 : i32
    %c0_i32_1 = arith.constant 0 : i32
    return %c0_i32, %c0_i32_0 : i32, i32
  }
  func.func @transform_2(%arg0: i32) -> (i32, i32) {
    %c0_i32 = arith.constant 0 : i32
    %c0_i32_0 = arith.constant 0 : i32
    %c0_i32_1 = arith.constant 0 : i32
    return %c0_i32, %c0_i32_0 : i32, i32
  }
  func.func @transform_3(%arg0: i32) -> (i32, i32) {
    %c0_i32 = arith.constant 0 : i32
    %c0_i32_0 = arith.constant 0 : i32
    %c0_i32_1 = arith.constant 0 : i32
    return %c0_i32, %c0_i32_0 : i32, i32
  }
  func.func @transform_4(%arg0: i32) -> (i32, i32) {
    %c0_i32 = arith.constant 0 : i32
    %c0_i32_0 = arith.constant 0 : i32
    %c0_i32_1 = arith.constant 0 : i32
    return %c0_i32, %c0_i32_0 : i32, i32
  }
  func.func @transform_5(%arg0: i32) -> (i32, i32) {
    %c0_i32 = arith.constant 0 : i32
    %c0_i32_0 = arith.constant 0 : i32
    %c0_i32_1 = arith.constant 0 : i32
    return %c0_i32, %c0_i32_0 : i32, i32
  }
  func.func @transform_6(%arg0: i32) -> (i32, i32) {
    %c0_i32 = arith.constant 0 : i32
    %c0_i32_0 = arith.constant 0 : i32
    %c0_i32_1 = arith.constant 0 : i32
    return %c0_i32, %c0_i32_0 : i32, i32
  }
  func.func @transform_7(%arg0: i32) -> (i32, i32) {
    %c0_i32 = arith.constant 0 : i32
    %c0_i32_0 = arith.constant 0 : i32
    %c0_i32_1 = arith.constant 0 : i32
    return %c0_i32, %c0_i32_0 : i32, i32
  }
  func.func @transform_8(%arg0: i32) -> (i32, i32) {
    %c0_i32 = arith.constant 0 : i32
    %c0_i32_0 = arith.constant 0 : i32
    %c0_i32_1 = arith.constant 0 : i32
    return %c0_i32, %c0_i32_0 : i32, i32
  }
  func.func @transform_9(%arg0: i32) -> (i32, i32) {
    %c0_i32 = arith.constant 0 : i32
    %c0_i32_0 = arith.constant 0 : i32
    %c0_i32_1 = arith.constant 0 : i32
    return %c0_i32, %c0_i32_0 : i32, i32
  }
  func.func @transform_10(%arg0: i32) -> (i32, i32) {
    %c0_i32 = arith.constant 0 : i32
    %c0_i32_0 = arith.constant 0 : i32
    %c0_i32_1 = arith.constant 0 : i32
    return %c0_i32, %c0_i32_0 : i32, i32
  }
  func.func @transform_11(%arg0: i32) -> (i32, i32) {
    %c0_i32 = arith.constant 0 : i32
    %c0_i32_0 = arith.constant 0 : i32
    return %arg0, %c0_i32 : i32, i32
  }
}

</mosaic_0001>

<llo_original>
// kernel: dqn_forward.1
$region0: #{dqn_forward.1}
  #allocation0 [shape = 'u32[]', space=smem, size = 0x4, offset = 0x4, fixed_abs, tag = 'smem constant byte address 0x4 - core index']
  #allocation1 [shape = 'u32[144,128]{1,0:T(1,128)}', space=vmem, size = 0x12000, scoped, tag = 'internal scratch']
  %s0 = inlined_call_operand.vmem [shape: bf16[64,768], index: 0, kind: input, shape index: {}]
  %s1 = inlined_call_operand.vmem [shape: bf16[768,256], index: 1, kind: input, shape index: {}]
  %s2 = inlined_call_operand.vmem [shape: f32[1,256], index: 2, kind: input, shape index: {}]
  %s3 = inlined_call_operand.vmem [shape: bf16[256,128], index: 3, kind: input, shape index: {}]
  %s4 = inlined_call_operand.vmem [shape: f32[1,128], index: 4, kind: input, shape index: {}]
  %s5 = inlined_call_operand.vmem [shape: bf16[128,128], index: 5, kind: input, shape index: {}]
  %s6 = inlined_call_operand.vmem [shape: f32[1,128], index: 6, kind: input, shape index: {}]
  %s7 = inlined_call_operand.vmem [shape: bf16[128,128], index: 7, kind: input, shape index: {}]
  %s8 = inlined_call_operand.vmem [shape: f32[1,128], index: 8, kind: input, shape index: {}]
  %s9 = inlined_call_operand.vmem [shape: bf16[128,128], index: 9, kind: input, shape index: {}]
  %s10 = inlined_call_operand.vmem [shape: f32[1,128], index: 10, kind: input, shape index: {}]
  %s11 = inlined_call_operand.vmem [shape: f32[64,128], index: 11, kind: output, shape index: {}]
  %s12 = sld [smem:[#allocation0]]
  $region77: #{dqn_forward.1} parent=0
    _
  %s14 = ssub.s32 1, %s12
  %s15 = scalar_select 0, %s14, %s12
  loop: start=0, step=1, limit=4
  $region2: #{dqn_forward.1} parent=0 // loop_pre_header
    _
  $region3: #{dqn_forward.1} parent=0 // loop_header
    %s17 = sphi 0, %s21
    %p18 = scmp.ge.s32.totalorder %s17, 4
    %s27 = sphi 0, %s29
    %s30 = sphi 0, %s27
    %s31 = sphi 0, %s30
    %s47 = sphi 0, %s31
    %s51 = sphi 0, %s51
    %s53 = sphi 0, %s51
    %s54 = sphi 0, %s53
    %s68 = sphi 0, %s54
    %s72 = sphi 0, %s72
    %s74 = sphi 0, %s72
    %s75 = sphi 0, %s74
    %s89 = sphi 0, %s75
    %s93 = sphi 0, %s93
    %s95 = sphi 0, %s93
    %s96 = sphi 0, %s95
    %s110 = sphi 0, %s96
    %s114 = sphi 0, %s114
    %s116 = sphi 0, %s114
    %s117 = sphi 0, %s116
    %s131 = sphi 0, %s117
    %s135 = sphi 0, %s135
    %s137 = sphi 0, %s135
    %s138 = sphi 0, %s137
    %s152 = sphi 0, %s138
    %s156 = sphi 0, %s156
    %s158 = sphi 0, %s156
    %s159 = sphi 0, %s158
    %s173 = sphi 0, %s159
    %s177 = sphi 0, %s177
    %s179 = sphi 0, %s177
    %s180 = sphi 0, %s179
    %s194 = sphi 0, %s180
    %s198 = sphi 0, %s198
    %s200 = sphi 0, %s198
    %s201 = sphi 0, %s200
    %s215 = sphi 0, %s201
    %s219 = sphi 0, %s219
    %s221 = sphi 0, %s219
    %s222 = sphi 0, %s221
    %s236 = sphi 0, %s222
    %s240 = sphi 0, %s240
    %s242 = sphi 0, %s240
    %s243 = sphi 0, %s242
    %s257 = sphi 0, %s243
    %s263 = sphi 0, %s265
    %s266 = sphi 0, %s263
    %s267 = sphi 0, %s266
    %s283 = sphi 0, %s267
  $region4: #{dqn_forward.1} parent=0 // loop_header_branch
    %20 = sbr.rel (%p18) target = $region8
  $region5: #{dqn_forward.1} parent=0 // loop_body
    %s22 = ssub.s32 %s17, 1
    %s23 = ssub.s32 %s17, 2
    %s24 = sadd.s32 %s17, 1
    %s25 = ssub.s32 %s17, %s24
    %p26 = scmp.eq.s32.totalorder %s25, 0
    %s28 = sadd.s32 %s27, 1
    %s29 = scalar_select %p26, %s27, %s28
    %p32 = pneg %p26
    %p33 = scmp.eq.s32.totalorder %s17, 1
    %p34 = por %p32, %p33
    %p35 = scmp.ne.s32.totalorder %s27, %s30
    %p36 = scmp.eq.s32.totalorder %s17, 0
    %p37 = por %p35, %p36
    %p38 = scmp.ne.s32.totalorder %s27, %s30
    %p39 = scmp.eq.s32.totalorder %s22, 1
    %p40 = por %p38, %p39
    %p41 = scmp.ne.s32.totalorder %s30, %s31
    %p42 = scmp.eq.s32.totalorder %s22, 0
    %p43 = por %p41, %p42
    %p44 = scmp.ne.s32.totalorder %s30, %s31
    %p45 = scmp.eq.s32.totalorder %s23, 1
    %p46 = por %p44, %p45
    %p48 = scmp.ne.s32.totalorder %s31, %s47
    %p49 = scmp.eq.s32.totalorder %s23, 0
    %p50 = por %p48, %p49
    %s52 = sadd.s32 %s51, 1
    %p55 = scmp.eq.s32.totalorder %s17, 1
    %p56 = scmp.ne.s32.totalorder %s51, %s53
    %p57 = scmp.eq.s32.totalorder %s17, 0
    %p58 = por %p56, %p57
    %p59 = scmp.ne.s32.totalorder %s51, %s53
    %p60 = scmp.eq.s32.totalorder %s22, 1
    %p61 = por %p59, %p60
    %p62 = scmp.ne.s32.totalorder %s53, %s54
    %p63 = scmp.eq.s32.totalorder %s22, 0
    %p64 = por %p62, %p63
    %p65 = scmp.ne.s32.totalorder %s53, %s54
    %p66 = scmp.eq.s32.totalorder %s23, 1
    %p67 = por %p65, %p66
    %p69 = scmp.ne.s32.totalorder %s54, %s68
    %p70 = scmp.eq.s32.totalorder %s23, 0
    %p71 = por %p69, %p70
    %s73 = sadd.s32 %s72, 1
    %p76 = scmp.eq.s32.totalorder %s17, 1
    %p77 = scmp.ne.s32.totalorder %s72, %s74
    %p78 = scmp.eq.s32.totalorder %s17, 0
    %p79 = por %p77, %p78
    %p80 = scmp.ne.s32.totalorder %s72, %s74
    %p81 = scmp.eq.s32.totalorder %s22, 1
    %p82 = por %p80, %p81
    %p83 = scmp.ne.s32.totalorder %s74, %s75
    %p84 = scmp.eq.s32.totalorder %s22, 0
    %p85 = por %p83, %p84
    %p86 = scmp.ne.s32.totalorder %s74, %s75
    %p87 = scmp.eq.s32.totalorder %s23, 1
    %p88 = por %p86, %p87
    %p90 = scmp.ne.s32.totalorder %s75, %s89
    %p91 = scmp.eq.s32.totalorder %s23, 0
    %p92 = por %p90, %p91
    %s94 = sadd.s32 %s93, 1
    %p97 = scmp.eq.s32.totalorder %s17, 1
    %p98 = scmp.ne.s32.totalorder %s93, %s95
    %p99 = scmp.eq.s32.totalorder %s17, 0
    %p100 = por %p98, %p99
    %p101 = scmp.ne.s32.totalorder %s93, %s95
    %p102 = scmp.eq.s32.totalorder %s22, 1
    %p103 = por %p101, %p102
    %p104 = scmp.ne.s32.totalorder %s95, %s96
    %p105 = scmp.eq.s32.totalorder %s22, 0
    %p106 = por %p104, %p105
    %p107 = scmp.ne.s32.totalorder %s95, %s96
    %p108 = scmp.eq.s32.totalorder %s23, 1
    %p109 = por %p107, %p108
    %p111 = scmp.ne.s32.totalorder %s96, %s110
    %p112 = scmp.eq.s32.totalorder %s23, 0
    %p113 = por %p111, %p112
    %s115 = sadd.s32 %s114, 1
    %p118 = scmp.eq.s32.totalorder %s17, 1
    %p119 = scmp.ne.s32.totalorder %s114, %s116
    %p120 = scmp.eq.s32.totalorder %s17, 0
    %p121 = por %p119, %p120
    %p122 = scmp.ne.s32.totalorder %s114, %s116
    %p123 = scmp.eq.s32.totalorder %s22, 1
    %p124 = por %p122, %p123
    %p125 = scmp.ne.s32.totalorder %s116, %s117
    %p126 = scmp.eq.s32.totalorder %s22, 0
    %p127 = por %p125, %p126
    %p128 = scmp.ne.s32.totalorder %s116, %s117
    %p129 = scmp.eq.s32.totalorder %s23, 1
    %p130 = por %p128, %p129
    %p132 = scmp.ne.s32.totalorder %s117, %s131
    %p133 = scmp.eq.s32.totalorder %s23, 0
    %p134 = por %p132, %p133
    %s136 = sadd.s32 %s135, 1
    %p139 = scmp.eq.s32.totalorder %s17, 1
    %p140 = scmp.ne.s32.totalorder %s135, %s137
    %p141 = scmp.eq.s32.totalorder %s17, 0
    %p142 = por %p140, %p141
    %p143 = scmp.ne.s32.totalorder %s135, %s137
    %p144 = scmp.eq.s32.totalorder %s22, 1
    %p145 = por %p143, %p144
    %p146 = scmp.ne.s32.totalorder %s137, %s138
    %p147 = scmp.eq.s32.totalorder %s22, 0
    %p148 = por %p146, %p147
    %p149 = scmp.ne.s32.totalorder %s137, %s138
    %p150 = scmp.eq.s32.totalorder %s23, 1
    %p151 = por %p149, %p150
    %p153 = scmp.ne.s32.totalorder %s138, %s152
    %p154 = scmp.eq.s32.totalorder %s23, 0
    %p155 = por %p153, %p154
    %s157 = sadd.s32 %s156, 1
    %p160 = scmp.eq.s32.totalorder %s17, 1
    %p161 = scmp.ne.s32.totalorder %s156, %s158
    %p162 = scmp.eq.s32.totalorder %s17, 0
    %p163 = por %p161, %p162
    %p164 = scmp.ne.s32.totalorder %s156, %s158
    %p165 = scmp.eq.s32.totalorder %s22, 1
    %p166 = por %p164, %p165
    %p167 = scmp.ne.s32.totalorder %s158, %s159
    %p168 = scmp.eq.s32.totalorder %s22, 0
    %p169 = por %p167, %p168
    %p170 = scmp.ne.s32.totalorder %s158, %s159
    %p171 = scmp.eq.s32.totalorder %s23, 1
    %p172 = por %p170, %p171
    %p174 = scmp.ne.s32.totalorder %s159, %s173
    %p175 = scmp.eq.s32.totalorder %s23, 0
    %p176 = por %p174, %p175
    %s178 = sadd.s32 %s177, 1
    %p181 = scmp.eq.s32.totalorder %s17, 1
    %p182 = scmp.ne.s32.totalorder %s177, %s179
    %p183 = scmp.eq.s32.totalorder %s17, 0
    %p184 = por %p182, %p183
    %p185 = scmp.ne.s32.totalorder %s177, %s179
    %p186 = scmp.eq.s32.totalorder %s22, 1
    %p187 = por %p185, %p186
    %p188 = scmp.ne.s32.totalorder %s179, %s180
    %p189 = scmp.eq.s32.totalorder %s22, 0
    %p190 = por %p188, %p189
    %p191 = scmp.ne.s32.totalorder %s179, %s180
    %p192 = scmp.eq.s32.totalorder %s23, 1
    %p193 = por %p191, %p192
    %p195 = scmp.ne.s32.totalorder %s180, %s194
    %p196 = scmp.eq.s32.totalorder %s23, 0
    %p197 = por %p195, %p196
    %s199 = sadd.s32 %s198, 1
    %p202 = scmp.eq.s32.totalorder %s17, 1
    %p203 = scmp.ne.s32.totalorder %s198, %s200
    %p204 = scmp.eq.s32.totalorder %s17, 0
    %p205 = por %p203, %p204
    %p206 = scmp.ne.s32.totalorder %s198, %s200
    %p207 = scmp.eq.s32.totalorder %s22, 1
    %p208 = por %p206, %p207
    %p209 = scmp.ne.s32.totalorder %s200, %s201
    %p210 = scmp.eq.s32.totalorder %s22, 0
    %p211 = por %p209, %p210
    %p212 = scmp.ne.s32.totalorder %s200, %s201
    %p213 = scmp.eq.s32.totalorder %s23, 1
    %p214 = por %p212, %p213
    %p216 = scmp.ne.s32.totalorder %s201, %s215
    %p217 = scmp.eq.s32.totalorder %s23, 0
    %p218 = por %p216, %p217
    %s220 = sadd.s32 %s219, 1
    %p223 = scmp.eq.s32.totalorder %s17, 1
    %p224 = scmp.ne.s32.totalorder %s219, %s221
    %p225 = scmp.eq.s32.totalorder %s17, 0
    %p226 = por %p224, %p225
    %p227 = scmp.ne.s32.totalorder %s219, %s221
    %p228 = scmp.eq.s32.totalorder %s22, 1
    %p229 = por %p227, %p228
    %p230 = scmp.ne.s32.totalorder %s221, %s222
    %p231 = scmp.eq.s32.totalorder %s22, 0
    %p232 = por %p230, %p231
    %p233 = scmp.ne.s32.totalorder %s221, %s222
    %p234 = scmp.eq.s32.totalorder %s23, 1
    %p235 = por %p233, %p234
    %p237 = scmp.ne.s32.totalorder %s222, %s236
    %p238 = scmp.eq.s32.totalorder %s23, 0
    %p239 = por %p237, %p238
    %s241 = sadd.s32 %s240, 1
    %p244 = scmp.eq.s32.totalorder %s17, 1
    %p245 = scmp.ne.s32.totalorder %s240, %s242
    %p246 = scmp.eq.s32.totalorder %s17, 0
    %p247 = por %p245, %p246
    %p248 = scmp.ne.s32.totalorder %s240, %s242
    %p249 = scmp.eq.s32.totalorder %s22, 1
    %p250 = por %p248, %p249
    %p251 = scmp.ne.s32.totalorder %s242, %s243
    %p252 = scmp.eq.s32.totalorder %s22, 0
    %p253 = por %p251, %p252
    %p254 = scmp.ne.s32.totalorder %s242, %s243
    %p255 = scmp.eq.s32.totalorder %s23, 1
    %p256 = por %p254, %p255
    %p258 = scmp.ne.s32.totalorder %s243, %s257
    %p259 = scmp.eq.s32.totalorder %s23, 0
    %p260 = por %p258, %p259
    %s261 = ssub.s32 %s17, %s24
    %p262 = scmp.eq.s32.totalorder %s261, 0
    %s264 = sadd.s32 %s263, 1
    %s265 = scalar_select %p262, %s263, %s264
    %p268 = pneg %p262
    %p269 = scmp.eq.s32.totalorder %s17, 1
    %p270 = por %p268, %p269
    %p271 = scmp.ne.s32.totalorder %s263, %s266
    %p272 = scmp.eq.s32.totalorder %s17, 0
    %p273 = por %p271, %p272
    %p274 = scmp.ne.s32.totalorder %s263, %s266
    %p275 = scmp.eq.s32.totalorder %s22, 1
    %p276 = por %p274, %p275
    %p277 = scmp.ne.s32.totalorder %s266, %s267
    %p278 = scmp.eq.s32.totalorder %s22, 0
    %p279 = por %p277, %p278
    %p280 = scmp.ne.s32.totalorder %s266, %s267
    %p281 = scmp.eq.s32.totalorder %s23, 1
    %p282 = por %p280, %p281
    %p284 = scmp.ne.s32.totalorder %s267, %s283
    %p285 = scmp.eq.s32.totalorder %s23, 0
    %p286 = por %p284, %p285
    %p287 = scmp.le.s32.totalorder 1, %s17
    %p288 = scmp.lt.s32.totalorder %s17, 3
    %p289 = pnand %p287, %p288
    %p290 = pneg %p289
    // Predicated region
    $region9: #{dqn_forward.1} parent=5 // pred_check
      _
    $region10: #{dqn_forward.1} parent=5 // pred_check_branch
      %292 = sbr.rel (%p289) target = $region12
    $region11: #{dqn_forward.1} parent=5 // pred_region
      %s293 = ssub.s32 %s17, 1
      // Predicated region
      $region13: #{dqn_forward.1} parent=11 // pred_check
        %p294 = pneg %p64
      $region14: #{dqn_forward.1} parent=11 // pred_check_branch
        %296 = sbr.rel (%p294) target = $region16
      $region15: #{dqn_forward.1} parent=11 // pred_region
        _
      $region16: #{dqn_forward.1} parent=11 // pred_fallthru
        _
      // Predicated region
      $region17: #{dqn_forward.1} parent=11 // pred_check
        %p297 = pneg %p85
      $region18: #{dqn_forward.1} parent=11 // pred_check_branch
        %299 = sbr.rel (%p297) target = $region20
      $region19: #{dqn_forward.1} parent=11 // pred_region
        _
      $region20: #{dqn_forward.1} parent=11 // pred_fallthru
        _
      // Predicated region
      $region21: #{dqn_forward.1} parent=11 // pred_check
        %p300 = pneg %p106
      $region22: #{dqn_forward.1} parent=11 // pred_check_branch
        %302 = sbr.rel (%p300) target = $region24
      $region23: #{dqn_forward.1} parent=11 // pred_region
        _
      $region24: #{dqn_forward.1} parent=11 // pred_fallthru
        _
      // Predicated region
      $region25: #{dqn_forward.1} parent=11 // pred_check
        %p303 = pneg %p127
      $region26: #{dqn_forward.1} parent=11 // pred_check_branch
        %305 = sbr.rel (%p303) target = $region28
      $region27: #{dqn_forward.1} parent=11 // pred_region
        _
      $region28: #{dqn_forward.1} parent=11 // pred_fallthru
        _
      // Predicated region
      $region29: #{dqn_forward.1} parent=11 // pred_check
        %p306 = pneg %p148
      $region30: #{dqn_forward.1} parent=11 // pred_check_branch
        %308 = sbr.rel (%p306) target = $region32
      $region31: #{dqn_forward.1} parent=11 // pred_region
        _
      $region32: #{dqn_forward.1} parent=11 // pred_fallthru
        _
      // Predicated region
      $region33: #{dqn_forward.1} parent=11 // pred_check
        %p309 = pneg %p169
      $region34: #{dqn_forward.1} parent=11 // pred_check_branch
        %311 = sbr.rel (%p309) target = $region36
      $region35: #{dqn_forward.1} parent=11 // pred_region
        _
      $region36: #{dqn_forward.1} parent=11 // pred_fallthru
        _
      // Predicated region
      $region37: #{dqn_forward.1} parent=11 // pred_check
        %p312 = pneg %p190
      $region38: #{dqn_forward.1} parent=11 // pred_check_branch
        %314 = sbr.rel (%p312) target = $region40
      $region39: #{dqn_forward.1} parent=11 // pred_region
        _
      $region40: #{dqn_forward.1} parent=11 // pred_fallthru
        _
      // Predicated region
      $region41: #{dqn_forward.1} parent=11 // pred_check
        %p315 = pneg %p211
      $region42: #{dqn_forward.1} parent=11 // pred_check_branch
        %317 = sbr.rel (%p315) target = $region44
      $region43: #{dqn_forward.1} parent=11 // pred_region
        _
      $region44: #{dqn_forward.1} parent=11 // pred_fallthru
        _
      // Predicated region
      $region45: #{dqn_forward.1} parent=11 // pred_check
        %p318 = pneg %p232
      $region46: #{dqn_forward.1} parent=11 // pred_check_branch
        %320 = sbr.rel (%p318) target = $region48
      $region47: #{dqn_forward.1} parent=11 // pred_region
        _
      $region48: #{dqn_forward.1} parent=11 // pred_fallthru
        _
      // Predicated region
      $region49: #{dqn_forward.1} parent=11 // pred_check
        %p321 = pneg %p253
      $region50: #{dqn_forward.1} parent=11 // pred_check_branch
        %323 = sbr.rel (%p321) target = $region52
      $region51: #{dqn_forward.1} parent=11 // pred_region
        _
      $region52: #{dqn_forward.1} parent=11 // pred_fallthru
        _
    $region12: #{dqn_forward.1} parent=5 // pred_fallthru
      _
    %p324 = scmp.lt.s32.totalorder %s17, 2
    // Predicated region
    $region53: #{dqn_forward.1} parent=5 // pred_check
      %p325 = pneg %p324
    $region54: #{dqn_forward.1} parent=5 // pred_check_branch
      %327 = sbr.rel (%p325) target = $region56
    $region55: #{dqn_forward.1} parent=5 // pred_region
      // Predicated region
      $region57: #{dqn_forward.1} parent=55 // pred_check
        %p328 = pneg %p37
      $region58: #{dqn_forward.1} parent=55 // pred_check_branch
        %330 = sbr.rel (%p328) target = $region60
      $region59: #{dqn_forward.1} parent=55 // pred_region
        %s331 = smul.u32 4, %s17
        %p332 = scmp.lt.s32.totalorder %s331, 7
        %s333 = scalar_select %p332, %s331, 7
        %s334 = smul.addr %s333, 6
        %s335 = smul.addr %s334, 4
        %s336 = scalar_lea.vmem %s0, %s335
        %s337 = smul.u32 4, %s17
      $region60: #{dqn_forward.1} parent=55 // pred_fallthru
        _
    $region56: #{dqn_forward.1} parent=5 // pred_fallthru
      _
    %p338 = scmp.le.s32.totalorder 1, %s17
    %p339 = scmp.lt.s32.totalorder %s17, 3
    %p340 = pnand %p338, %p339
    %p341 = pneg %p340
    // Predicated region
    $region61: #{dqn_forward.1} parent=5 // pred_check
      _
    $region62: #{dqn_forward.1} parent=5 // pred_check_branch
      %343 = sbr.rel (%p340) target = $region64
    $region63: #{dqn_forward.1} parent=5 // pred_region
      %s344 = ssub.s32 %s17, 1
      %s345 = smul.u32 4, %s22
      %p346 = scmp.lt.s32.totalorder %s345, 7
      %s347 = scalar_select %p346, %s345, 7
      %s348 = smul.addr %s347, 6
      %s349 = smul.addr %s348, 4
      %s350 = scalar_lea.vmem %s0, %s349
      %p351 = pneg %p43
      %p352 = pneg %p40
      %p353 = pneg %p64
      %p354 = pneg %p61
      %p355 = pneg %p85
      %p356 = pneg %p82
      %p357 = pneg %p106
      %p358 = pneg %p103
      %p359 = pneg %p127
      %p360 = pneg %p124
      %p361 = pneg %p148
      %p362 = pneg %p145
      %p363 = pneg %p169
      %p364 = pneg %p166
      %p365 = pneg %p190
      %p366 = pneg %p187
      %p367 = pneg %p211
      %p368 = pneg %p208
      %p369 = pneg %p232
      %p370 = pneg %p229
      %p371 = pneg %p253
      %p372 = pneg %p250
      %p373 = pneg %p279
      %p374 = pneg %p276
      %s375 = smul.u32 4, %s22
      %p376 = scmp.lt.s32.totalorder %s375, 7
      %s377 = scalar_select %p376, %s375, 7
      %s378 = smul.addr %s377, 8
      %s379 = scalar_lea.vmem %s11, %s378
      %s380 = smul.u32 4, %s22
      %p381 = scmp.lt.s32.totalorder %s380, 7
      %s382 = scalar_select %p381, %s380, 7
      %s383 = smul.addr %s382, 6
      %s384 = smul.addr %s383, 4
      %s385 = scalar_lea.vmem %s0, %s384
      %s386 = smul.u32 4, %s22
      %s387 = smul.u32 4, %s22
      %p388 = scmp.lt.s32.totalorder %s387, 7
      %s389 = scalar_select %p388, %s387, 7
      %s390 = smul.addr %s389, 8
      %s391 = scalar_lea.vmem %s11, %s390
      %s392 = smul.u32 4, %s22
      %v394 = vld [vmem:[%s385] sm:$0xff]
      %v395 = vld [vmem:[%s385 + $0x8] sm:$0xff]
      %v396 = vld [vmem:[%s385 + $0x10] sm:$0xff]
      %v397 = vld [vmem:[%s385 + $0x18] sm:$0xff]
      %v398 = vld [vmem:[%s385 + $0x20] sm:$0xff]
      %v399 = vld [vmem:[%s385 + $0x28] sm:$0xff]
      %v400 = vld [vmem:[%s385 + $0x30] sm:$0xff]
      %v401 = vld [vmem:[%s385 + $0x38] sm:$0xff]
      %v402 = vld [vmem:[%s385 + $0x40] sm:$0xff]
      %v403 = vld [vmem:[%s385 + $0x48] sm:$0xff]
      %v404 = vld [vmem:[%s385 + $0x50] sm:$0xff]
      %v405 = vld [vmem:[%s385 + $0x58] sm:$0xff]
      %v406 = vld [vmem:[%s1] sm:$0xff]
      %v407 = vld [vmem:[%s1 + $0x8] sm:$0xff]
      %v408 = vld [vmem:[%s1 + $0x10] sm:$0xff]
      %v409 = vld [vmem:[%s1 + $0x18] sm:$0xff]
      %v410 = vld [vmem:[%s1 + $0x20] sm:$0xff]
      %v411 = vld [vmem:[%s1 + $0x28] sm:$0xff]
      %v412 = vld [vmem:[%s1 + $0x30] sm:$0xff]
      %v413 = vld [vmem:[%s1 + $0x38] sm:$0xff]
      %v414 = vld [vmem:[%s1 + $0x40] sm:$0xff]
      %v415 = vld [vmem:[%s1 + $0x48] sm:$0xff]
      %v416 = vld [vmem:[%s1 + $0x50] sm:$0xff]
      %v417 = vld [vmem:[%s1 + $0x58] sm:$0xff]
      %v418 = vld [vmem:[%s1 + $0x60] sm:$0xff]
      %v419 = vld [vmem:[%s1 + $0x68] sm:$0xff]
      %v420 = vld [vmem:[%s1 + $0x70] sm:$0xff]
      %v421 = vld [vmem:[%s1 + $0x78] sm:$0xff]
      %v422 = vld [vmem:[%s1 + $0x80] sm:$0xff]
      %v423 = vld [vmem:[%s1 + $0x88] sm:$0xff]
      %v424 = vld [vmem:[%s1 + $0x90] sm:$0xff]
      %v425 = vld [vmem:[%s1 + $0x98] sm:$0xff]
      %v426 = vld [vmem:[%s1 + $0xa0] sm:$0xff]
      %v427 = vld [vmem:[%s1 + $0xa8] sm:$0xff]
      %v428 = vld [vmem:[%s1 + $0xb0] sm:$0xff]
      %v429 = vld [vmem:[%s1 + $0xb8] sm:$0xff]
      %v430 = vld [vmem:[%s1 + $0xc0] sm:$0xff]
      %v431 = vld [vmem:[%s1 + $0xc8] sm:$0xff]
      %v432 = vld [vmem:[%s1 + $0xd0] sm:$0xff]
      %v433 = vld [vmem:[%s1 + $0xd8] sm:$0xff]
      %v434 = vld [vmem:[%s1 + $0xe0] sm:$0xff]
      %v435 = vld [vmem:[%s1 + $0xe8] sm:$0xff]
      %v436 = vld [vmem:[%s1 + $0xf0] sm:$0xff]
      %v437 = vld [vmem:[%s1 + $0xf8] sm:$0xff]
      %v438 = vld [vmem:[%s1 + $0x100] sm:$0xff]
      %v439 = vld [vmem:[%s1 + $0x108] sm:$0xff]
      %v440 = vld [vmem:[%s1 + $0x110] sm:$0xff]
      %v441 = vld [vmem:[%s1 + $0x118] sm:$0xff]
      %v442 = vld [vmem:[%s1 + $0x120] sm:$0xff]
      %v443 = vld [vmem:[%s1 + $0x128] sm:$0xff]
      %v444 = vld [vmem:[%s1 + $0x130] sm:$0xff]
      %v445 = vld [vmem:[%s1 + $0x138] sm:$0xff]
      %v446 = vld [vmem:[%s1 + $0x140] sm:$0xff]
      %v447 = vld [vmem:[%s1 + $0x148] sm:$0xff]
      %v448 = vld [vmem:[%s1 + $0x150] sm:$0xff]
      %v449 = vld [vmem:[%s1 + $0x158] sm:$0xff]
      %v450 = vld [vmem:[%s1 + $0x160] sm:$0xff]
      %v451 = vld [vmem:[%s1 + $0x168] sm:$0xff]
      %v452 = vld [vmem:[%s1 + $0x170] sm:$0xff]
      %v453 = vld [vmem:[%s1 + $0x178] sm:$0xff]
      %v454 = vld [vmem:[%s1 + $0x180] sm:$0xff]
      %v455 = vld [vmem:[%s1 + $0x188] sm:$0xff]
      %v456 = vld [vmem:[%s1 + $0x190] sm:$0xff]
      %v457 = vld [vmem:[%s1 + $0x198] sm:$0xff]
      %v458 = vld [vmem:[%s1 + $0x1a0] sm:$0xff]
      %v459 = vld [vmem:[%s1 + $0x1a8] sm:$0xff]
      %v460 = vld [vmem:[%s1 + $0x1b0] sm:$0xff]
      %v461 = vld [vmem:[%s1 + $0x1b8] sm:$0xff]
      %v462 = vld [vmem:[%s1 + $0x1c0] sm:$0xff]
      %v463 = vld [vmem:[%s1 + $0x1c8] sm:$0xff]
      %v464 = vld [vmem:[%s1 + $0x1d0] sm:$0xff]
      %v465 = vld [vmem:[%s1 + $0x1d8] sm:$0xff]
      %v466 = vld [vmem:[%s1 + $0x1e0] sm:$0xff]
      %v467 = vld [vmem:[%s1 + $0x1e8] sm:$0xff]
      %v468 = vld [vmem:[%s1 + $0x1f0] sm:$0xff]
      %v469 = vld [vmem:[%s1 + $0x1f8] sm:$0xff]
      %v470 = vld [vmem:[%s1 + $0x200] sm:$0xff]
      %v471 = vld [vmem:[%s1 + $0x208] sm:$0xff]
      %v472 = vld [vmem:[%s1 + $0x210] sm:$0xff]
      %v473 = vld [vmem:[%s1 + $0x218] sm:$0xff]
      %v474 = vld [vmem:[%s1 + $0x220] sm:$0xff]
      %v475 = vld [vmem:[%s1 + $0x228] sm:$0xff]
      %v476 = vld [vmem:[%s1 + $0x230] sm:$0xff]
      %v477 = vld [vmem:[%s1 + $0x238] sm:$0xff]
      %v478 = vld [vmem:[%s1 + $0x240] sm:$0xff]
      %v479 = vld [vmem:[%s1 + $0x248] sm:$0xff]
      %v480 = vld [vmem:[%s1 + $0x250] sm:$0xff]
      %v481 = vld [vmem:[%s1 + $0x258] sm:$0xff]
      %v482 = vld [vmem:[%s1 + $0x260] sm:$0xff]
      %v483 = vld [vmem:[%s1 + $0x268] sm:$0xff]
      %v484 = vld [vmem:[%s1 + $0x270] sm:$0xff]
      %v485 = vld [vmem:[%s1 + $0x278] sm:$0xff]
      %v486 = vld [vmem:[%s1 + $0x280] sm:$0xff]
      %v487 = vld [vmem:[%s1 + $0x288] sm:$0xff]
      %v488 = vld [vmem:[%s1 + $0x290] sm:$0xff]
      %v489 = vld [vmem:[%s1 + $0x298] sm:$0xff]
      %v490 = vld [vmem:[%s1 + $0x2a0] sm:$0xff]
      %v491 = vld [vmem:[%s1 + $0x2a8] sm:$0xff]
      %v492 = vld [vmem:[%s1 + $0x2b0] sm:$0xff]
      %v493 = vld [vmem:[%s1 + $0x2b8] sm:$0xff]
      %v494 = vld [vmem:[%s1 + $0x2c0] sm:$0xff]
      %v495 = vld [vmem:[%s1 + $0x2c8] sm:$0xff]
      %v496 = vld [vmem:[%s1 + $0x2d0] sm:$0xff]
      %v497 = vld [vmem:[%s1 + $0x2d8] sm:$0xff]
      %v498 = vld [vmem:[%s1 + $0x2e0] sm:$0xff]
      %v499 = vld [vmem:[%s1 + $0x2e8] sm:$0xff]
      %v500 = vld [vmem:[%s1 + $0x2f0] sm:$0xff]
      %v501 = vld [vmem:[%s1 + $0x2f8] sm:$0xff]
      %v502 = vld [vmem:[%s2] sm:$0x3]
      %v504 = vlaneseq
      %v505 = vshrl.u32 %v504, 7
      %v506 = vsub.s32 0, %v505
      %v507 = vrot.slane %v502, %v506
      %v508 = vlaneseq
      %v509 = vshrl.u32 %v508, 7
      %v510 = vsub.s32 1, %v509
      %v511 = vrot.slane %v502, %v510
      %v526 = vunpack.c.l.b16 %v394
      %v527 = vunpack.c.h.b16 %v394
      %v528 = vunpack.c.l.b16 %v395
      %v529 = vunpack.c.h.b16 %v395
      %v530 = vunpack.c.l.b16 %v396
      %v531 = vunpack.c.h.b16 %v396
      %v532 = vunpack.c.l.b16 %v397
      %v533 = vunpack.c.h.b16 %v397
      %v534 = vunpack.c.l.b16 %v398
      %v535 = vunpack.c.h.b16 %v398
      %v536 = vunpack.c.l.b16 %v399
      %v537 = vunpack.c.h.b16 %v399
      %v538 = vunpack.c.l.b16 %v400
      %v539 = vunpack.c.h.b16 %v400
      %v540 = vunpack.c.l.b16 %v401
      %v541 = vunpack.c.h.b16 %v401
      %v542 = vunpack.c.l.b16 %v402
      %v543 = vunpack.c.h.b16 %v402
      %v544 = vunpack.c.l.b16 %v403
      %v545 = vunpack.c.h.b16 %v403
      %v546 = vunpack.c.l.b16 %v404
      %v547 = vunpack.c.h.b16 %v404
      %v548 = vunpack.c.l.b16 %v405
      %v549 = vunpack.c.h.b16 %v405
      %v550 = vpack.c.b16 %v532, %v526
      %v551 = vpack.c.b16 %v533, %v527
      %v552 = vpack.c.b16 %v534, %v528
      %v553 = vpack.c.b16 %v535, %v529
      %v554 = vpack.c.b16 %v536, %v530
      %v555 = vpack.c.b16 %v537, %v531
      %v556 = vpack.c.b16 %v544, %v538
      %v557 = vpack.c.b16 %v545, %v539
      %v558 = vpack.c.b16 %v546, %v540
      %v559 = vpack.c.b16 %v547, %v541
      %v560 = vpack.c.b16 %v548, %v542
      %v561 = vpack.c.b16 %v549, %v543
      %v670 = vunpack.c.l.b16 %v406
      %v671 = vunpack.c.h.b16 %v406
      %v672 = vunpack.c.l.b16 %v407
      %v673 = vunpack.c.h.b16 %v407
      %v674 = vunpack.c.l.b16 %v408
      %v675 = vunpack.c.h.b16 %v408
      %v676 = vunpack.c.l.b16 %v409
      %v677 = vunpack.c.h.b16 %v409
      %v678 = vunpack.c.l.b16 %v410
      %v679 = vunpack.c.h.b16 %v410
      %v680 = vunpack.c.l.b16 %v411
      %v681 = vunpack.c.h.b16 %v411
      %v682 = vunpack.c.l.b16 %v412
      %v683 = vunpack.c.h.b16 %v412
      %v684 = vunpack.c.l.b16 %v413
      %v685 = vunpack.c.h.b16 %v413
      %v686 = vunpack.c.l.b16 %v414
      %v687 = vunpack.c.h.b16 %v414
      %v688 = vunpack.c.l.b16 %v415
      %v689 = vunpack.c.h.b16 %v415
      %v690 = vunpack.c.l.b16 %v416
      %v691 = vunpack.c.h.b16 %v416
      %v692 = vunpack.c.l.b16 %v417
      %v693 = vunpack.c.h.b16 %v417
      %v694 = vunpack.c.l.b16 %v418
      %v695 = vunpack.c.h.b16 %v418
      %v696 = vunpack.c.l.b16 %v419
      %v697 = vunpack.c.h.b16 %v419
      %v698 = vunpack.c.l.b16 %v420
      %v699 = vunpack.c.h.b16 %v420
      %v700 = vunpack.c.l.b16 %v421
      %v701 = vunpack.c.h.b16 %v421
      %v702 = vunpack.c.l.b16 %v422
      %v703 = vunpack.c.h.b16 %v422
      %v704 = vunpack.c.l.b16 %v423
      %v705 = vunpack.c.h.b16 %v423
      %v706 = vunpack.c.l.b16 %v424
      %v707 = vunpack.c.h.b16 %v424
      %v708 = vunpack.c.l.b16 %v425
      %v709 = vunpack.c.h.b16 %v425
      %v710 = vunpack.c.l.b16 %v426
      %v711 = vunpack.c.h.b16 %v426
      %v712 = vunpack.c.l.b16 %v427
      %v713 = vunpack.c.h.b16 %v427
      %v714 = vunpack.c.l.b16 %v428
      %v715 = vunpack.c.h.b16 %v428
      %v716 = vunpack.c.l.b16 %v429
      %v717 = vunpack.c.h.b16 %v429
      %v718 = vunpack.c.l.b16 %v430
      %v719 = vunpack.c.h.b16 %v430
      %v720 = vunpack.c.l.b16 %v431
      %v721 = vunpack.c.h.b16 %v431
      %v722 = vunpack.c.l.b16 %v432
      %v723 = vunpack.c.h.b16 %v432
      %v724 = vunpack.c.l.b16 %v433
      %v725 = vunpack.c.h.b16 %v433
      %v726 = vunpack.c.l.b16 %v434
      %v727 = vunpack.c.h.b16 %v434
      %v728 = vunpack.c.l.b16 %v435
      %v729 = vunpack.c.h.b16 %v435
      %v730 = vunpack.c.l.b16 %v436
      %v731 = vunpack.c.h.b16 %v436
      %v732 = vunpack.c.l.b16 %v437
      %v733 = vunpack.c.h.b16 %v437
      %v734 = vunpack.c.l.b16 %v438
      %v735 = vunpack.c.h.b16 %v438
      %v736 = vunpack.c.l.b16 %v439
      %v737 = vunpack.c.h.b16 %v439
      %v738 = vunpack.c.l.b16 %v440
      %v739 = vunpack.c.h.b16 %v440
      %v740 = vunpack.c.l.b16 %v441
      %v741 = vunpack.c.h.b16 %v441
      %v742 = vunpack.c.l.b16 %v442
      %v743 = vunpack.c.h.b16 %v442
      %v744 = vunpack.c.l.b16 %v443
      %v745 = vunpack.c.h.b16 %v443
      %v746 = vunpack.c.l.b16 %v444
      %v747 = vunpack.c.h.b16 %v444
      %v748 = vunpack.c.l.b16 %v445
      %v749 = vunpack.c.h.b16 %v445
      %v750 = vunpack.c.l.b16 %v446
      %v751 = vunpack.c.h.b16 %v446
      %v752 = vunpack.c.l.b16 %v447
      %v753 = vunpack.c.h.b16 %v447
      %v754 = vunpack.c.l.b16 %v448
      %v755 = vunpack.c.h.b16 %v448
      %v756 = vunpack.c.l.b16 %v449
      %v757 = vunpack.c.h.b16 %v449
      %v758 = vunpack.c.l.b16 %v450
      %v759 = vunpack.c.h.b16 %v450
      %v760 = vunpack.c.l.b16 %v451
      %v761 = vunpack.c.h.b16 %v451
      %v762 = vunpack.c.l.b16 %v452
      %v763 = vunpack.c.h.b16 %v452
      %v764 = vunpack.c.l.b16 %v453
      %v765 = vunpack.c.h.b16 %v453
      %v766 = vunpack.c.l.b16 %v454
      %v767 = vunpack.c.h.b16 %v454
      %v768 = vunpack.c.l.b16 %v455
      %v769 = vunpack.c.h.b16 %v455
      %v770 = vunpack.c.l.b16 %v456
      %v771 = vunpack.c.h.b16 %v456
      %v772 = vunpack.c.l.b16 %v457
      %v773 = vunpack.c.h.b16 %v457
      %v774 = vunpack.c.l.b16 %v458
      %v775 = vunpack.c.h.b16 %v458
      %v776 = vunpack.c.l.b16 %v459
      %v777 = vunpack.c.h.b16 %v459
      %v778 = vunpack.c.l.b16 %v460
      %v779 = vunpack.c.h.b16 %v460
      %v780 = vunpack.c.l.b16 %v461
      %v781 = vunpack.c.h.b16 %v461
      %v782 = vunpack.c.l.b16 %v462
      %v783 = vunpack.c.h.b16 %v462
      %v784 = vunpack.c.l.b16 %v463
      %v785 = vunpack.c.h.b16 %v463
      %v786 = vunpack.c.l.b16 %v464
      %v787 = vunpack.c.h.b16 %v464
      %v788 = vunpack.c.l.b16 %v465
      %v789 = vunpack.c.h.b16 %v465
      %v790 = vunpack.c.l.b16 %v466
      %v791 = vunpack.c.h.b16 %v466
      %v792 = vunpack.c.l.b16 %v467
      %v793 = vunpack.c.h.b16 %v467
      %v794 = vunpack.c.l.b16 %v468
      %v795 = vunpack.c.h.b16 %v468
      %v796 = vunpack.c.l.b16 %v469
      %v797 = vunpack.c.h.b16 %v469
      %v798 = vunpack.c.l.b16 %v470
      %v799 = vunpack.c.h.b16 %v470
      %v800 = vunpack.c.l.b16 %v471
      %v801 = vunpack.c.h.b16 %v471
      %v802 = vunpack.c.l.b16 %v472
      %v803 = vunpack.c.h.b16 %v472
      %v804 = vunpack.c.l.b16 %v473
      %v805 = vunpack.c.h.b16 %v473
      %v806 = vunpack.c.l.b16 %v474
      %v807 = vunpack.c.h.b16 %v474
      %v808 = vunpack.c.l.b16 %v475
      %v809 = vunpack.c.h.b16 %v475
      %v810 = vunpack.c.l.b16 %v476
      %v811 = vunpack.c.h.b16 %v476
      %v812 = vunpack.c.l.b16 %v477
      %v813 = vunpack.c.h.b16 %v477
      %v814 = vunpack.c.l.b16 %v478
      %v815 = vunpack.c.h.b16 %v478
      %v816 = vunpack.c.l.b16 %v479
      %v817 = vunpack.c.h.b16 %v479
      %v818 = vunpack.c.l.b16 %v480
      %v819 = vunpack.c.h.b16 %v480
      %v820 = vunpack.c.l.b16 %v481
      %v821 = vunpack.c.h.b16 %v481
      %v822 = vunpack.c.l.b16 %v482
      %v823 = vunpack.c.h.b16 %v482
      %v824 = vunpack.c.l.b16 %v483
      %v825 = vunpack.c.h.b16 %v483
      %v826 = vunpack.c.l.b16 %v484
      %v827 = vunpack.c.h.b16 %v484
      %v828 = vunpack.c.l.b16 %v485
      %v829 = vunpack.c.h.b16 %v485
      %v830 = vunpack.c.l.b16 %v486
      %v831 = vunpack.c.h.b16 %v486
      %v832 = vunpack.c.l.b16 %v487
      %v833 = vunpack.c.h.b16 %v487
      %v834 = vunpack.c.l.b16 %v488
      %v835 = vunpack.c.h.b16 %v488
      %v836 = vunpack.c.l.b16 %v489
      %v837 = vunpack.c.h.b16 %v489
      %v838 = vunpack.c.l.b16 %v490
      %v839 = vunpack.c.h.b16 %v490
      %v840 = vunpack.c.l.b16 %v491
      %v841 = vunpack.c.h.b16 %v491
      %v842 = vunpack.c.l.b16 %v492
      %v843 = vunpack.c.h.b16 %v492
      %v844 = vunpack.c.l.b16 %v493
      %v845 = vunpack.c.h.b16 %v493
      %v846 = vunpack.c.l.b16 %v494
      %v847 = vunpack.c.h.b16 %v494
      %v848 = vunpack.c.l.b16 %v495
      %v849 = vunpack.c.h.b16 %v495
      %v850 = vunpack.c.l.b16 %v496
      %v851 = vunpack.c.h.b16 %v496
      %v852 = vunpack.c.l.b16 %v497
      %v853 = vunpack.c.h.b16 %v497
      %v854 = vunpack.c.l.b16 %v498
      %v855 = vunpack.c.h.b16 %v498
      %v856 = vunpack.c.l.b16 %v499
      %v857 = vunpack.c.h.b16 %v499
      %v858 = vunpack.c.l.b16 %v500
      %v859 = vunpack.c.h.b16 %v500
      %v860 = vunpack.c.l.b16 %v501
      %v861 = vunpack.c.h.b16 %v501
      %v862 = vpack.c.b16 %v672, %v670
      %v863 = vpack.c.b16 %v673, %v671
      %v864 = vpack.c.b16 %v676, %v674
      %v865 = vpack.c.b16 %v677, %v675
      %v866 = vpack.c.b16 %v680, %v678
      %v867 = vpack.c.b16 %v681, %v679
      %v868 = vpack.c.b16 %v684, %v682
      %v869 = vpack.c.b16 %v685, %v683
      %v870 = vpack.c.b16 %v688, %v686
      %v871 = vpack.c.b16 %v689, %v687
      %v872 = vpack.c.b16 %v692, %v690
      %v873 = vpack.c.b16 %v693, %v691
      %v874 = vpack.c.b16 %v696, %v694
      %v875 = vpack.c.b16 %v697, %v695
      %v876 = vpack.c.b16 %v700, %v698
      %v877 = vpack.c.b16 %v701, %v699
      %v878 = vpack.c.b16 %v704, %v702
      %v879 = vpack.c.b16 %v705, %v703
      %v880 = vpack.c.b16 %v708, %v706
      %v881 = vpack.c.b16 %v709, %v707
      %v882 = vpack.c.b16 %v712, %v710
      %v883 = vpack.c.b16 %v713, %v711
      %v884 = vpack.c.b16 %v716, %v714
      %v885 = vpack.c.b16 %v717, %v715
      %v886 = vpack.c.b16 %v720, %v718
      %v887 = vpack.c.b16 %v721, %v719
      %v888 = vpack.c.b16 %v724, %v722
      %v889 = vpack.c.b16 %v725, %v723
      %v890 = vpack.c.b16 %v728, %v726
      %v891 = vpack.c.b16 %v729, %v727
      %v892 = vpack.c.b16 %v732, %v730
      %v893 = vpack.c.b16 %v733, %v731
      %v894 = vpack.c.b16 %v736, %v734
      %v895 = vpack.c.b16 %v737, %v735
      %v896 = vpack.c.b16 %v740, %v738
      %v897 = vpack.c.b16 %v741, %v739
      %v898 = vpack.c.b16 %v744, %v742
      %v899 = vpack.c.b16 %v745, %v743
      %v900 = vpack.c.b16 %v748, %v746
      %v901 = vpack.c.b16 %v749, %v747
      %v902 = vpack.c.b16 %v752, %v750
      %v903 = vpack.c.b16 %v753, %v751
      %v904 = vpack.c.b16 %v756, %v754
      %v905 = vpack.c.b16 %v757, %v755
      %v906 = vpack.c.b16 %v760, %v758
      %v907 = vpack.c.b16 %v761, %v759
      %v908 = vpack.c.b16 %v764, %v762
      %v909 = vpack.c.b16 %v765, %v763
      %v910 = vpack.c.b16 %v768, %v766
      %v911 = vpack.c.b16 %v769, %v767
      %v912 = vpack.c.b16 %v772, %v770
      %v913 = vpack.c.b16 %v773, %v771
      %v914 = vpack.c.b16 %v776, %v774
      %v915 = vpack.c.b16 %v777, %v775
      %v916 = vpack.c.b16 %v780, %v778
      %v917 = vpack.c.b16 %v781, %v779
      %v918 = vpack.c.b16 %v784, %v782
      %v919 = vpack.c.b16 %v785, %v783
      %v920 = vpack.c.b16 %v788, %v786
      %v921 = vpack.c.b16 %v789, %v787
      %v922 = vpack.c.b16 %v792, %v790
      %v923 = vpack.c.b16 %v793, %v791
      %v924 = vpack.c.b16 %v796, %v794
      %v925 = vpack.c.b16 %v797, %v795
      %v926 = vpack.c.b16 %v800, %v798
      %v927 = vpack.c.b16 %v801, %v799
      %v928 = vpack.c.b16 %v804, %v802
      %v929 = vpack.c.b16 %v805, %v803
      %v930 = vpack.c.b16 %v808, %v806
      %v931 = vpack.c.b16 %v809, %v807
      %v932 = vpack.c.b16 %v812, %v810
      %v933 = vpack.c.b16 %v813, %v811
      %v934 = vpack.c.b16 %v816, %v814
      %v935 = vpack.c.b16 %v817, %v815
      %v936 = vpack.c.b16 %v820, %v818
      %v937 = vpack.c.b16 %v821, %v819
      %v938 = vpack.c.b16 %v824, %v822
      %v939 = vpack.c.b16 %v825, %v823
      %v940 = vpack.c.b16 %v828, %v826
      %v941 = vpack.c.b16 %v829, %v827
      %v942 = vpack.c.b16 %v832, %v830
      %v943 = vpack.c.b16 %v833, %v831
      %v944 = vpack.c.b16 %v836, %v834
      %v945 = vpack.c.b16 %v837, %v835
      %v946 = vpack.c.b16 %v840, %v838
      %v947 = vpack.c.b16 %v841, %v839
      %v948 = vpack.c.b16 %v844, %v842
      %v949 = vpack.c.b16 %v845, %v843
      %v950 = vpack.c.b16 %v848, %v846
      %v951 = vpack.c.b16 %v849, %v847
      %v952 = vpack.c.b16 %v852, %v850
      %v953 = vpack.c.b16 %v853, %v851
      %v954 = vpack.c.b16 %v856, %v854
      %v955 = vpack.c.b16 %v857, %v855
      %v956 = vpack.c.b16 %v860, %v858
      %v957 = vpack.c.b16 %v861, %v859
      %1054 = vmatprep.subr.bf16.mxu0 %v863
      %1055 = vmatpush1.bf16.msra.mxu0 %v862
      %1056 = vmatprep.subr.bf16.mxu0 %v865
      %1057 = vmatpush1.bf16.msra.mxu0 %v864
      %1058 = vmatprep.subr.bf16.mxu0 %v867
      %1059 = vmatpush1.bf16.msra.mxu0 %v866
      %1060 = vmatprep.subr.bf16.mxu0 %v869
      %1061 = vmatpush1.bf16.msra.mxu0 %v868
      %1062 = vmatprep.subr.bf16.mxu0 %v871
      %1063 = vmatpush1.bf16.msra.mxu0 %v870
      %1064 = vmatprep.subr.bf16.mxu0 %v873
      %1065 = vmatpush1.bf16.msra.mxu0 %v872
      %1066 = vmatprep.subr.bf16.mxu0 %v875
      %1067 = vmatpush1.bf16.msra.mxu0 %v874
      %1068 = vmatprep.subr.bf16.mxu0 %v877
      %1069 = vmatpush1.bf16.msra.mxu0 %v876
      %1070 = vmatprep.subr.bf16.mxu0 %v879
      %1071 = vmatpush1.bf16.msra.mxu0 %v878
      %1072 = vmatprep.subr.bf16.mxu0 %v881
      %1073 = vmatpush1.bf16.msra.mxu0 %v880
      %1074 = vmatprep.subr.bf16.mxu0 %v883
      %1075 = vmatpush1.bf16.msra.mxu0 %v882
      %1076 = vmatprep.subr.bf16.mxu0 %v885
      %1077 = vmatpush1.bf16.msra.mxu0 %v884
      %1078 = vmatprep.subr.bf16.mxu0 %v887
      %1079 = vmatpush1.bf16.msra.mxu0 %v886
      %1080 = vmatprep.subr.bf16.mxu0 %v889
      %1081 = vmatpush1.bf16.msra.mxu0 %v888
      %1082 = vmatprep.subr.bf16.mxu0 %v891
      %1083 = vmatpush1.bf16.msra.mxu0 %v890
      %1084 = vmatprep.subr.bf16.mxu0 %v893
      %1085 = vmatpush1.bf16.msra.mxu0 %v892
      %1086 = vmatprep.mubr.bf16.mxu0 %v551
      %1087 = vmatmul.mubr.bf16.gmra.mrb[0].mxu0 %v550
      %v1088 = vpop.f32.mrb[0].mxu0
      %v1089 = vadd.f32 %v507, %v1088
      %v1090 = vpop.f32.mrb[0].mxu0
      %v1091 = vadd.f32 %v511, %v1090
      %v1092 = vpop.f32.mrb[0].mxu0
      %v1093 = vadd.f32 %v507, %v1092
      %v1094 = vpop.f32.mrb[0].mxu0
      %v1095 = vadd.f32 %v511, %v1094
      %1096 = vmatprep.mubr.bf16.mxu0 %v557
      %1097 = vmatmul.mubr.bf16.gmra.mrb[0].mxu0 %v556
      %v1098 = vpop.f32.mrb[0].mxu0
      %v1099 = vadd.f32 %v507, %v1098
      %v1100 = vpop.f32.mrb[0].mxu0
      %v1101 = vadd.f32 %v511, %v1100
      %v1102 = vpop.f32.mrb[0].mxu0
      %v1103 = vadd.f32 %v507, %v1102
      %v1104 = vpop.f32.mrb[0].mxu0
      %v1105 = vadd.f32 %v511, %v1104
      %1106 = vdwg.mxu0
      %1107 = vmatprep.subr.bf16.mxu0 %v895
      %1108 = vmatpush1.bf16.msra.mxu0 %v894
      %1109 = vmatprep.subr.bf16.mxu0 %v897
      %1110 = vmatpush1.bf16.msra.mxu0 %v896
      %1111 = vmatprep.subr.bf16.mxu0 %v899
      %1112 = vmatpush1.bf16.msra.mxu0 %v898
      %1113 = vmatprep.subr.bf16.mxu0 %v901
      %1114 = vmatpush1.bf16.msra.mxu0 %v900
      %1115 = vmatprep.subr.bf16.mxu0 %v903
      %1116 = vmatpush1.bf16.msra.mxu0 %v902
      %1117 = vmatprep.subr.bf16.mxu0 %v905
      %1118 = vmatpush1.bf16.msra.mxu0 %v904
      %1119 = vmatprep.subr.bf16.mxu0 %v907
      %1120 = vmatpush1.bf16.msra.mxu0 %v906
      %1121 = vmatprep.subr.bf16.mxu0 %v909
      %1122 = vmatpush1.bf16.msra.mxu0 %v908
      %1123 = vmatprep.subr.bf16.mxu0 %v911
      %1124 = vmatpush1.bf16.msra.mxu0 %v910
      %1125 = vmatprep.subr.bf16.mxu0 %v913
      %1126 = vmatpush1.bf16.msra.mxu0 %v912
      %1127 = vmatprep.subr.bf16.mxu0 %v915
      %1128 = vmatpush1.bf16.msra.mxu0 %v914
      %1129 = vmatprep.subr.bf16.mxu0 %v917
      %1130 = vmatpush1.bf16.msra.mxu0 %v916
      %1131 = vmatprep.subr.bf16.mxu0 %v919
      %1132 = vmatpush1.bf16.msra.mxu0 %v918
      %1133 = vmatprep.subr.bf16.mxu0 %v921
      %1134 = vmatpush1.bf16.msra.mxu0 %v920
      %1135 = vmatprep.subr.bf16.mxu0 %v923
      %1136 = vmatpush1.bf16.msra.mxu0 %v922
      %1137 = vmatprep.subr.bf16.mxu0 %v925
      %1138 = vmatpush1.bf16.msra.mxu0 %v924
      %1139 = vmatprep.mubr.bf16.mxu0 %v553
      %1140 = vmatmul.mubr.bf16.gmra.mrb[0].mxu0 %v552
      %v1141 = vpop.f32.mrb[0].mxu0
      %v1142 = vadd.f32 %v1089, %v1141
      %v1143 = vpop.f32.mrb[0].mxu0
      %v1144 = vadd.f32 %v1091, %v1143
      %v1145 = vpop.f32.mrb[0].mxu0
      %v1146 = vadd.f32 %v1093, %v1145
      %v1147 = vpop.f32.mrb[0].mxu0
      %v1148 = vadd.f32 %v1095, %v1147
      %1149 = vmatprep.mubr.bf16.mxu0 %v559
      %1150 = vmatmul.mubr.bf16.gmra.mrb[0].mxu0 %v558
      %v1151 = vpop.f32.mrb[0].mxu0
      %v1152 = vadd.f32 %v1099, %v1151
      %v1153 = vpop.f32.mrb[0].mxu0
      %v1154 = vadd.f32 %v1101, %v1153
      %v1155 = vpop.f32.mrb[0].mxu0
      %v1156 = vadd.f32 %v1103, %v1155
      %v1157 = vpop.f32.mrb[0].mxu0
      %v1158 = vadd.f32 %v1105, %v1157
      %1159 = vdwg.mxu0
      %1160 = vmatprep.subr.bf16.mxu0 %v927
      %1161 = vmatpush1.bf16.msra.mxu0 %v926
      %1162 = vmatprep.subr.bf16.mxu0 %v929
      %1163 = vmatpush1.bf16.msra.mxu0 %v928
      %1164 = vmatprep.subr.bf16.mxu0 %v931
      %1165 = vmatpush1.bf16.msra.mxu0 %v930
      %1166 = vmatprep.subr.bf16.mxu0 %v933
      %1167 = vmatpush1.bf16.msra.mxu0 %v932
      %1168 = vmatprep.subr.bf16.mxu0 %v935
      %1169 = vmatpush1.bf16.msra.mxu0 %v934
      %1170 = vmatprep.subr.bf16.mxu0 %v937
      %1171 = vmatpush1.bf16.msra.mxu0 %v936
      %1172 = vmatprep.subr.bf16.mxu0 %v939
      %1173 = vmatpush1.bf16.msra.mxu0 %v938
      %1174 = vmatprep.subr.bf16.mxu0 %v941
      %1175 = vmatpush1.bf16.msra.mxu0 %v940
      %1176 = vmatprep.subr.bf16.mxu0 %v943
      %1177 = vmatpush1.bf16.msra.mxu0 %v942
      %1178 = vmatprep.subr.bf16.mxu0 %v945
      %1179 = vmatpush1.bf16.msra.mxu0 %v944
      %1180 = vmatprep.subr.bf16.mxu0 %v947
      %1181 = vmatpush1.bf16.msra.mxu0 %v946
      %1182 = vmatprep.subr.bf16.mxu0 %v949
      %1183 = vmatpush1.bf16.msra.mxu0 %v948
      %1184 = vmatprep.subr.bf16.mxu0 %v951
      %1185 = vmatpush1.bf16.msra.mxu0 %v950
      %1186 = vmatprep.subr.bf16.mxu0 %v953
      %1187 = vmatpush1.bf16.msra.mxu0 %v952
      %1188 = vmatprep.subr.bf16.mxu0 %v955
      %1189 = vmatpush1.bf16.msra.mxu0 %v954
      %1190 = vmatprep.subr.bf16.mxu0 %v957
      %1191 = vmatpush1.bf16.msra.mxu0 %v956
      %1192 = vmatprep.mubr.bf16.mxu0 %v555
      %1193 = vmatmul.mubr.bf16.gmra.mrb[0].mxu0 %v554
      %v1194 = vpop.f32.mrb[0].mxu0
      %v1195 = vadd.f32 %v1142, %v1194
      %v1196 = vpop.f32.mrb[0].mxu0
      %v1197 = vadd.f32 %v1144, %v1196
      %v1198 = vpop.f32.mrb[0].mxu0
      %v1199 = vadd.f32 %v1146, %v1198
      %v1200 = vpop.f32.mrb[0].mxu0
      %v1201 = vadd.f32 %v1148, %v1200
      %1202 = vmatprep.mubr.bf16.mxu0 %v561
      %1203 = vmatmul.mubr.bf16.gmra.mrb[0].mxu0 %v560
      %v1204 = vpop.f32.mrb[0].mxu0
      %v1205 = vadd.f32 %v1152, %v1204
      %v1206 = vpop.f32.mrb[0].mxu0
      %v1207 = vadd.f32 %v1154, %v1206
      %v1208 = vpop.f32.mrb[0].mxu0
      %v1209 = vadd.f32 %v1156, %v1208
      %v1210 = vpop.f32.mrb[0].mxu0
      %v1211 = vadd.f32 %v1158, %v1210
      %1212 = vdwg.mxu0
      %v1213 = vmax.f32 %v1195, 0.0
      %v1214 = vmax.f32 %v1197, 0.0
      %v1215 = vmax.f32 %v1199, 0.0
      %v1216 = vmax.f32 %v1201, 0.0
      %v1217 = vmax.f32 %v1205, 0.0
      %v1218 = vmax.f32 %v1207, 0.0
      %v1219 = vmax.f32 %v1209, 0.0
      %v1220 = vmax.f32 %v1211, 0.0
      %v1221 = vpack.c.bf16 %v1215, %v1213
      %v1222 = vpack.c.bf16 %v1216, %v1214
      %v1223 = vpack.c.bf16 %v1219, %v1217
      %v1224 = vpack.c.bf16 %v1220, %v1218
      %v1225 = vld [vmem:[%s3] sm:$0xf]
      %v1226 = vld [vmem:[%s3 + $0x4] sm:$0xf]
      %v1227 = vld [vmem:[%s3 + $0x8] sm:$0xf]
      %v1228 = vld [vmem:[%s3 + $0xc] sm:$0xf]
      %v1229 = vld [vmem:[%s3 + $0x10] sm:$0xf]
      %v1230 = vld [vmem:[%s3 + $0x14] sm:$0xf]
      %v1231 = vld [vmem:[%s3 + $0x18] sm:$0xf]
      %v1232 = vld [vmem:[%s3 + $0x1c] sm:$0xf]
      %v1233 = vld [vmem:[%s3 + $0x20] sm:$0xf]
      %v1234 = vld [vmem:[%s3 + $0x24] sm:$0xf]
      %v1235 = vld [vmem:[%s3 + $0x28] sm:$0xf]
      %v1236 = vld [vmem:[%s3 + $0x2c] sm:$0xf]
      %v1237 = vld [vmem:[%s3 + $0x30] sm:$0xf]
      %v1238 = vld [vmem:[%s3 + $0x34] sm:$0xf]
      %v1239 = vld [vmem:[%s3 + $0x38] sm:$0xf]
      %v1240 = vld [vmem:[%s3 + $0x3c] sm:$0xf]
      %v1241 = vld [vmem:[%s3 + $0x40] sm:$0xf]
      %v1242 = vld [vmem:[%s3 + $0x44] sm:$0xf]
      %v1243 = vld [vmem:[%s3 + $0x48] sm:$0xf]
      %v1244 = vld [vmem:[%s3 + $0x4c] sm:$0xf]
      %v1245 = vld [vmem:[%s3 + $0x50] sm:$0xf]
      %v1246 = vld [vmem:[%s3 + $0x54] sm:$0xf]
      %v1247 = vld [vmem:[%s3 + $0x58] sm:$0xf]
      %v1248 = vld [vmem:[%s3 + $0x5c] sm:$0xf]
      %v1249 = vld [vmem:[%s3 + $0x60] sm:$0xf]
      %v1250 = vld [vmem:[%s3 + $0x64] sm:$0xf]
      %v1251 = vld [vmem:[%s3 + $0x68] sm:$0xf]
      %v1252 = vld [vmem:[%s3 + $0x6c] sm:$0xf]
      %v1253 = vld [vmem:[%s3 + $0x70] sm:$0xf]
      %v1254 = vld [vmem:[%s3 + $0x74] sm:$0xf]
      %v1255 = vld [vmem:[%s3 + $0x78] sm:$0xf]
      %v1256 = vld [vmem:[%s3 + $0x7c] sm:$0xf]
      %v1257 = vld [vmem:[%s4] sm:$0x1]
      %v1259 = vlaneseq
      %v1260 = vshrl.u32 %v1259, 7
      %v1261 = vsub.s32 0, %v1260
      %v1262 = vrot.slane %v1257, %v1261
      %v1296 = vunpack.c.l.b16 %v1225
      %v1297 = vunpack.c.l.b16 %v1226
      %v1298 = vunpack.c.l.b16 %v1227
      %v1299 = vunpack.c.l.b16 %v1228
      %v1300 = vunpack.c.l.b16 %v1229
      %v1301 = vunpack.c.l.b16 %v1230
      %v1302 = vunpack.c.l.b16 %v1231
      %v1303 = vunpack.c.l.b16 %v1232
      %v1304 = vunpack.c.l.b16 %v1233
      %v1305 = vunpack.c.l.b16 %v1234
      %v1306 = vunpack.c.l.b16 %v1235
      %v1307 = vunpack.c.l.b16 %v1236
      %v1308 = vunpack.c.l.b16 %v1237
      %v1309 = vunpack.c.l.b16 %v1238
      %v1310 = vunpack.c.l.b16 %v1239
      %v1311 = vunpack.c.l.b16 %v1240
      %v1312 = vunpack.c.l.b16 %v1241
      %v1313 = vunpack.c.l.b16 %v1242
      %v1314 = vunpack.c.l.b16 %v1243
      %v1315 = vunpack.c.l.b16 %v1244
      %v1316 = vunpack.c.l.b16 %v1245
      %v1317 = vunpack.c.l.b16 %v1246
      %v1318 = vunpack.c.l.b16 %v1247
      %v1319 = vunpack.c.l.b16 %v1248
      %v1320 = vunpack.c.l.b16 %v1249
      %v1321 = vunpack.c.l.b16 %v1250
      %v1322 = vunpack.c.l.b16 %v1251
      %v1323 = vunpack.c.l.b16 %v1252
      %v1324 = vunpack.c.l.b16 %v1253
      %v1325 = vunpack.c.l.b16 %v1254
      %v1326 = vunpack.c.l.b16 %v1255
      %v1327 = vunpack.c.l.b16 %v1256
      %v1328 = vpack.c.b16 %v1297, %v1296
      %v1329 = vpack.c.b16 %v1299, %v1298
      %v1330 = vpack.c.b16 %v1301, %v1300
      %v1331 = vpack.c.b16 %v1303, %v1302
      %v1332 = vpack.c.b16 %v1305, %v1304
      %v1333 = vpack.c.b16 %v1307, %v1306
      %v1334 = vpack.c.b16 %v1309, %v1308
      %v1335 = vpack.c.b16 %v1311, %v1310
      %v1336 = vpack.c.b16 %v1313, %v1312
      %v1337 = vpack.c.b16 %v1315, %v1314
      %v1338 = vpack.c.b16 %v1317, %v1316
      %v1339 = vpack.c.b16 %v1319, %v1318
      %v1340 = vpack.c.b16 %v1321, %v1320
      %v1341 = vpack.c.b16 %v1323, %v1322
      %v1342 = vpack.c.b16 %v1325, %v1324
      %v1343 = vpack.c.b16 %v1327, %v1326
      %1360 = vmatprep.subr.bf16.mxu0 0
      %1361 = vmatpush1.bf16.msra.mxu0 %v1328
      %1362 = vmatprep.subr.bf16.mxu0 0
      %1363 = vmatpush1.bf16.msra.mxu0 %v1329
      %1364 = vmatprep.subr.bf16.mxu0 0
      %1365 = vmatpush1.bf16.msra.mxu0 %v1330
      %1366 = vmatprep.subr.bf16.mxu0 0
      %1367 = vmatpush1.bf16.msra.mxu0 %v1331
      %1368 = vmatprep.subr.bf16.mxu0 0
      %1369 = vmatpush1.bf16.msra.mxu0 %v1332
      %1370 = vmatprep.subr.bf16.mxu0 0
      %1371 = vmatpush1.bf16.msra.mxu0 %v1333
      %1372 = vmatprep.subr.bf16.mxu0 0
      %1373 = vmatpush1.bf16.msra.mxu0 %v1334
      %1374 = vmatprep.subr.bf16.mxu0 0
      %1375 = vmatpush1.bf16.msra.mxu0 %v1335
      %1376 = vmatprep.subr.bf16.mxu0 0
      %1377 = vmatpush1.bf16.msra.mxu0 %v1336
      %1378 = vmatprep.subr.bf16.mxu0 0
      %1379 = vmatpush1.bf16.msra.mxu0 %v1337
      %1380 = vmatprep.subr.bf16.mxu0 0
      %1381 = vmatpush1.bf16.msra.mxu0 %v1338
      %1382 = vmatprep.subr.bf16.mxu0 0
      %1383 = vmatpush1.bf16.msra.mxu0 %v1339
      %1384 = vmatprep.subr.bf16.mxu0 0
      %1385 = vmatpush1.bf16.msra.mxu0 %v1340
      %1386 = vmatprep.subr.bf16.mxu0 0
      %1387 = vmatpush1.bf16.msra.mxu0 %v1341
      %1388 = vmatprep.subr.bf16.mxu0 0
      %1389 = vmatpush1.bf16.msra.mxu0 %v1342
      %1390 = vmatprep.subr.bf16.mxu0 0
      %1391 = vmatpush1.bf16.msra.mxu0 %v1343
      %1392 = vmatprep.mubr.bf16.mxu0 %v1222
      %1393 = vmatmul.mubr.bf16.gmra.mrb[0].mxu0 %v1221
      %v1394 = vpop.f32.mrb[0].mxu0
      %v1395 = vadd.f32 %v1262, %v1394
      %v1396 = vpop.f32.mrb[0].mxu0
      %v1397 = vpop.f32.mrb[0].mxu0
      %v1398 = vadd.f32 %v1262, %v1397
      %v1399 = vpop.f32.mrb[0].mxu0
      %1400 = vmatprep.mubr.bf16.mxu0 %v1224
      %1401 = vmatmul.mubr.bf16.gmra.mrb[0].mxu0 %v1223
      %v1402 = vpop.f32.mrb[0].mxu0
      %v1403 = vadd.f32 %v1262, %v1402
      %v1404 = vpop.f32.mrb[0].mxu0
      %v1405 = vpop.f32.mrb[0].mxu0
      %v1406 = vadd.f32 %v1262, %v1405
      %v1407 = vpop.f32.mrb[0].mxu0
      %1408 = vdwg.mxu0
      %v1409 = vmax.f32 %v1395, 0.0
      %v1410 = vmax.f32 %v1398, 0.0
      %v1411 = vmax.f32 %v1403, 0.0
      %v1412 = vmax.f32 %v1406, 0.0
      %v1413 = vpack.c.bf16 %v1410, %v1409
      %v1414 = vpack.c.bf16 %v1412, %v1411
      %v1415 = vld [vmem:[%s5] sm:$0xf]
      %v1416 = vld [vmem:[%s5 + $0x4] sm:$0xf]
      %v1417 = vld [vmem:[%s5 + $0x8] sm:$0xf]
      %v1418 = vld [vmem:[%s5 + $0xc] sm:$0xf]
      %v1419 = vld [vmem:[%s5 + $0x10] sm:$0xf]
      %v1420 = vld [vmem:[%s5 + $0x14] sm:$0xf]
      %v1421 = vld [vmem:[%s5 + $0x18] sm:$0xf]
      %v1422 = vld [vmem:[%s5 + $0x1c] sm:$0xf]
      %v1423 = vld [vmem:[%s5 + $0x20] sm:$0xf]
      %v1424 = vld [vmem:[%s5 + $0x24] sm:$0xf]
      %v1425 = vld [vmem:[%s5 + $0x28] sm:$0xf]
      %v1426 = vld [vmem:[%s5 + $0x2c] sm:$0xf]
      %v1427 = vld [vmem:[%s5 + $0x30] sm:$0xf]
      %v1428 = vld [vmem:[%s5 + $0x34] sm:$0xf]
      %v1429 = vld [vmem:[%s5 + $0x38] sm:$0xf]
      %v1430 = vld [vmem:[%s5 + $0x3c] sm:$0xf]
      %v1431 = vld [vmem:[%s6] sm:$0x1]
      %v1433 = vlaneseq
      %v1434 = vshrl.u32 %v1433, 7
      %v1435 = vsub.s32 0, %v1434
      %v1436 = vrot.slane %v1431, %v1435
      %v1454 = vunpack.c.l.b16 %v1415
      %v1455 = vunpack.c.l.b16 %v1416
      %v1456 = vunpack.c.l.b16 %v1417
      %v1457 = vunpack.c.l.b16 %v1418
      %v1458 = vunpack.c.l.b16 %v1419
      %v1459 = vunpack.c.l.b16 %v1420
      %v1460 = vunpack.c.l.b16 %v1421
      %v1461 = vunpack.c.l.b16 %v1422
      %v1462 = vunpack.c.l.b16 %v1423
      %v1463 = vunpack.c.l.b16 %v1424
      %v1464 = vunpack.c.l.b16 %v1425
      %v1465 = vunpack.c.l.b16 %v1426
      %v1466 = vunpack.c.l.b16 %v1427
      %v1467 = vunpack.c.l.b16 %v1428
      %v1468 = vunpack.c.l.b16 %v1429
      %v1469 = vunpack.c.l.b16 %v1430
      %v1470 = vpack.c.b16 %v1455, %v1454
      %v1471 = vpack.c.b16 %v1457, %v1456
      %v1472 = vpack.c.b16 %v1459, %v1458
      %v1473 = vpack.c.b16 %v1461, %v1460
      %v1474 = vpack.c.b16 %v1463, %v1462
      %v1475 = vpack.c.b16 %v1465, %v1464
      %v1476 = vpack.c.b16 %v1467, %v1466
      %v1477 = vpack.c.b16 %v1469, %v1468
      %1486 = vmatprep.subr.bf16.mxu0 0
      %1487 = vmatpush1.bf16.msra.mxu0 %v1470
      %1488 = vmatprep.subr.bf16.mxu0 0
      %1489 = vmatpush1.bf16.msra.mxu0 %v1471
      %1490 = vmatprep.subr.bf16.mxu0 0
      %1491 = vmatpush1.bf16.msra.mxu0 %v1472
      %1492 = vmatprep.subr.bf16.mxu0 0
      %1493 = vmatpush1.bf16.msra.mxu0 %v1473
      %1494 = vmatprep.subr.bf16.mxu0 0
      %1495 = vmatpush1.bf16.msra.mxu0 %v1474
      %1496 = vmatprep.subr.bf16.mxu0 0
      %1497 = vmatpush1.bf16.msra.mxu0 %v1475
      %1498 = vmatprep.subr.bf16.mxu0 0
      %1499 = vmatpush1.bf16.msra.mxu0 %v1476
      %1500 = vmatprep.subr.bf16.mxu0 0
      %1501 = vmatpush1.bf16.msra.mxu0 %v1477
      %1502 = vmatprep.subr.bf16.mxu0 0
      %1503 = vmatpush1.bf16.msra.mxu0 0
      %1504 = vmatprep.subr.bf16.mxu0 0
      %1505 = vmatpush1.bf16.msra.mxu0 0
      %1506 = vmatprep.subr.bf16.mxu0 0
      %1507 = vmatpush1.bf16.msra.mxu0 0
      %1508 = vmatprep.subr.bf16.mxu0 0
      %1509 = vmatpush1.bf16.msra.mxu0 0
      %1510 = vmatprep.subr.bf16.mxu0 0
      %1511 = vmatpush1.bf16.msra.mxu0 0
      %1512 = vmatprep.subr.bf16.mxu0 0
      %1513 = vmatpush1.bf16.msra.mxu0 0
      %1514 = vmatprep.subr.bf16.mxu0 0
      %1515 = vmatpush1.bf16.msra.mxu0 0
      %1516 = vmatprep.subr.bf16.mxu0 0
      %1517 = vmatpush1.bf16.msra.mxu0 0
      %1518 = vmatprep.mubr.bf16.mxu0 0
      %1519 = vmatmul.mubr.bf16.gmra.mrb[0].mxu0 %v1413
      %v1520 = vpop.f32.mrb[0].mxu0
      %v1521 = vadd.f32 %v1436, %v1520
      %v1522 = vpop.f32.mrb[0].mxu0
      %v1523 = vpop.f32.mrb[0].mxu0
      %v1524 = vadd.f32 %v1436, %v1523
      %v1525 = vpop.f32.mrb[0].mxu0
      %1526 = vmatprep.mubr.bf16.mxu0 0
      %1527 = vmatmul.mubr.bf16.gmra.mrb[0].mxu0 %v1414
      %v1528 = vpop.f32.mrb[0].mxu0
      %v1529 = vadd.f32 %v1436, %v1528
      %v1530 = vpop.f32.mrb[0].mxu0
      %v1531 = vpop.f32.mrb[0].mxu0
      %v1532 = vadd.f32 %v1436, %v1531
      %v1533 = vpop.f32.mrb[0].mxu0
      %1534 = vdwg.mxu0
      %v1535 = vmax.f32 %v1521, 0.0
      %v1536 = vmax.f32 %v1524, 0.0
      %v1537 = vmax.f32 %v1529, 0.0
      %v1538 = vmax.f32 %v1532, 0.0
      %v1539 = vpack.c.bf16 %v1536, %v1535
      %v1540 = vpack.c.bf16 %v1538, %v1537
      %v1541 = vld [vmem:[%s7] sm:$0xf]
      %v1542 = vld [vmem:[%s7 + $0x4] sm:$0xf]
      %v1543 = vld [vmem:[%s7 + $0x8] sm:$0xf]
      %v1544 = vld [vmem:[%s7 + $0xc] sm:$0xf]
      %v1545 = vld [vmem:[%s7 + $0x10] sm:$0xf]
      %v1546 = vld [vmem:[%s7 + $0x14] sm:$0xf]
      %v1547 = vld [vmem:[%s7 + $0x18] sm:$0xf]
      %v1548 = vld [vmem:[%s7 + $0x1c] sm:$0xf]
      %v1549 = vld [vmem:[%s7 + $0x20] sm:$0xf]
      %v1550 = vld [vmem:[%s7 + $0x24] sm:$0xf]
      %v1551 = vld [vmem:[%s7 + $0x28] sm:$0xf]
      %v1552 = vld [vmem:[%s7 + $0x2c] sm:$0xf]
      %v1553 = vld [vmem:[%s7 + $0x30] sm:$0xf]
      %v1554 = vld [vmem:[%s7 + $0x34] sm:$0xf]
      %v1555 = vld [vmem:[%s7 + $0x38] sm:$0xf]
      %v1556 = vld [vmem:[%s7 + $0x3c] sm:$0xf]
      %v1557 = vld [vmem:[%s8] sm:$0x1]
      %v1559 = vlaneseq
      %v1560 = vshrl.u32 %v1559, 7
      %v1561 = vsub.s32 0, %v1560
      %v1562 = vrot.slane %v1557, %v1561
      %v1580 = vunpack.c.l.b16 %v1541
      %v1581 = vunpack.c.l.b16 %v1542
      %v1582 = vunpack.c.l.b16 %v1543
      %v1583 = vunpack.c.l.b16 %v1544
      %v1584 = vunpack.c.l.b16 %v1545
      %v1585 = vunpack.c.l.b16 %v1546
      %v1586 = vunpack.c.l.b16 %v1547
      %v1587 = vunpack.c.l.b16 %v1548
      %v1588 = vunpack.c.l.b16 %v1549
      %v1589 = vunpack.c.l.b16 %v1550
      %v1590 = vunpack.c.l.b16 %v1551
      %v1591 = vunpack.c.l.b16 %v1552
      %v1592 = vunpack.c.l.b16 %v1553
      %v1593 = vunpack.c.l.b16 %v1554
      %v1594 = vunpack.c.l.b16 %v1555
      %v1595 = vunpack.c.l.b16 %v1556
      %v1596 = vpack.c.b16 %v1581, %v1580
      %v1597 = vpack.c.b16 %v1583, %v1582
      %v1598 = vpack.c.b16 %v1585, %v1584
      %v1599 = vpack.c.b16 %v1587, %v1586
      %v1600 = vpack.c.b16 %v1589, %v1588
      %v1601 = vpack.c.b16 %v1591, %v1590
      %v1602 = vpack.c.b16 %v1593, %v1592
      %v1603 = vpack.c.b16 %v1595, %v1594
      %1612 = vmatprep.subr.bf16.mxu0 0
      %1613 = vmatpush1.bf16.msra.mxu0 %v1596
      %1614 = vmatprep.subr.bf16.mxu0 0
      %1615 = vmatpush1.bf16.msra.mxu0 %v1597
      %1616 = vmatprep.subr.bf16.mxu0 0
      %1617 = vmatpush1.bf16.msra.mxu0 %v1598
      %1618 = vmatprep.subr.bf16.mxu0 0
      %1619 = vmatpush1.bf16.msra.mxu0 %v1599
      %1620 = vmatprep.subr.bf16.mxu0 0
      %1621 = vmatpush1.bf16.msra.mxu0 %v1600
      %1622 = vmatprep.subr.bf16.mxu0 0
      %1623 = vmatpush1.bf16.msra.mxu0 %v1601
      %1624 = vmatprep.subr.bf16.mxu0 0
      %1625 = vmatpush1.bf16.msra.mxu0 %v1602
      %1626 = vmatprep.subr.bf16.mxu0 0
      %1627 = vmatpush1.bf16.msra.mxu0 %v1603
      %1628 = vmatprep.subr.bf16.mxu0 0
      %1629 = vmatpush1.bf16.msra.mxu0 0
      %1630 = vmatprep.subr.bf16.mxu0 0
      %1631 = vmatpush1.bf16.msra.mxu0 0
      %1632 = vmatprep.subr.bf16.mxu0 0
      %1633 = vmatpush1.bf16.msra.mxu0 0
      %1634 = vmatprep.subr.bf16.mxu0 0
      %1635 = vmatpush1.bf16.msra.mxu0 0
      %1636 = vmatprep.subr.bf16.mxu0 0
      %1637 = vmatpush1.bf16.msra.mxu0 0
      %1638 = vmatprep.subr.bf16.mxu0 0
      %1639 = vmatpush1.bf16.msra.mxu0 0
      %1640 = vmatprep.subr.bf16.mxu0 0
      %1641 = vmatpush1.bf16.msra.mxu0 0
      %1642 = vmatprep.subr.bf16.mxu0 0
      %1643 = vmatpush1.bf16.msra.mxu0 0
      %1644 = vmatprep.mubr.bf16.mxu0 0
      %1645 = vmatmul.mubr.bf16.gmra.mrb[0].mxu0 %v1539
      %v1646 = vpop.f32.mrb[0].mxu0
      %v1647 = vadd.f32 %v1562, %v1646
      %v1648 = vpop.f32.mrb[0].mxu0
      %v1649 = vpop.f32.mrb[0].mxu0
      %v1650 = vadd.f32 %v1562, %v1649
      %v1651 = vpop.f32.mrb[0].mxu0
      %1652 = vmatprep.mubr.bf16.mxu0 0
      %1653 = vmatmul.mubr.bf16.gmra.mrb[0].mxu0 %v1540
      %v1654 = vpop.f32.mrb[0].mxu0
      %v1655 = vadd.f32 %v1562, %v1654
      %v1656 = vpop.f32.mrb[0].mxu0
      %v1657 = vpop.f32.mrb[0].mxu0
      %v1658 = vadd.f32 %v1562, %v1657
      %v1659 = vpop.f32.mrb[0].mxu0
      %1660 = vdwg.mxu0
      %v1661 = vmax.f32 %v1647, 0.0
      %v1662 = vmax.f32 %v1650, 0.0
      %v1663 = vmax.f32 %v1655, 0.0
      %v1664 = vmax.f32 %v1658, 0.0
      %v1665 = vpack.c.bf16 %v1662, %v1661
      %v1666 = vpack.c.bf16 %v1664, %v1663
      %v1667 = vld [vmem:[%s9] sm:$0xf]
      %v1668 = vld [vmem:[%s9 + $0x4] sm:$0xf]
      %v1669 = vld [vmem:[%s9 + $0x8] sm:$0xf]
      %v1670 = vld [vmem:[%s9 + $0xc] sm:$0xf]
      %v1671 = vld [vmem:[%s9 + $0x10] sm:$0xf]
      %v1672 = vld [vmem:[%s9 + $0x14] sm:$0xf]
      %v1673 = vld [vmem:[%s9 + $0x18] sm:$0xf]
      %v1674 = vld [vmem:[%s9 + $0x1c] sm:$0xf]
      %v1675 = vld [vmem:[%s9 + $0x20] sm:$0xf]
      %v1676 = vld [vmem:[%s9 + $0x24] sm:$0xf]
      %v1677 = vld [vmem:[%s9 + $0x28] sm:$0xf]
      %v1678 = vld [vmem:[%s9 + $0x2c] sm:$0xf]
      %v1679 = vld [vmem:[%s9 + $0x30] sm:$0xf]
      %v1680 = vld [vmem:[%s9 + $0x34] sm:$0xf]
      %v1681 = vld [vmem:[%s9 + $0x38] sm:$0xf]
      %v1682 = vld [vmem:[%s9 + $0x3c] sm:$0xf]
      %v1683 = vld [vmem:[%s10] sm:$0x1]
      %v1685 = vlaneseq
      %v1686 = vshrl.u32 %v1685, 7
      %v1687 = vsub.s32 0, %v1686
      %v1688 = vrot.slane %v1683, %v1687
      %v1706 = vunpack.c.l.b16 %v1667
      %v1707 = vunpack.c.l.b16 %v1668
      %v1708 = vunpack.c.l.b16 %v1669
      %v1709 = vunpack.c.l.b16 %v1670
      %v1710 = vunpack.c.l.b16 %v1671
      %v1711 = vunpack.c.l.b16 %v1672
      %v1712 = vunpack.c.l.b16 %v1673
      %v1713 = vunpack.c.l.b16 %v1674
      %v1714 = vunpack.c.l.b16 %v1675
      %v1715 = vunpack.c.l.b16 %v1676
      %v1716 = vunpack.c.l.b16 %v1677
      %v1717 = vunpack.c.l.b16 %v1678
      %v1718 = vunpack.c.l.b16 %v1679
      %v1719 = vunpack.c.l.b16 %v1680
      %v1720 = vunpack.c.l.b16 %v1681
      %v1721 = vunpack.c.l.b16 %v1682
      %v1722 = vpack.c.b16 %v1707, %v1706
      %v1723 = vpack.c.b16 %v1709, %v1708
      %v1724 = vpack.c.b16 %v1711, %v1710
      %v1725 = vpack.c.b16 %v1713, %v1712
      %v1726 = vpack.c.b16 %v1715, %v1714
      %v1727 = vpack.c.b16 %v1717, %v1716
      %v1728 = vpack.c.b16 %v1719, %v1718
      %v1729 = vpack.c.b16 %v1721, %v1720
      %1738 = vmatprep.subr.bf16.mxu0 0
      %1739 = vmatpush1.bf16.msra.mxu0 %v1722
      %1740 = vmatprep.subr.bf16.mxu0 0
      %1741 = vmatpush1.bf16.msra.mxu0 %v1723
      %1742 = vmatprep.subr.bf16.mxu0 0
      %1743 = vmatpush1.bf16.msra.mxu0 %v1724
      %1744 = vmatprep.subr.bf16.mxu0 0
      %1745 = vmatpush1.bf16.msra.mxu0 %v1725
      %1746 = vmatprep.subr.bf16.mxu0 0
      %1747 = vmatpush1.bf16.msra.mxu0 %v1726
      %1748 = vmatprep.subr.bf16.mxu0 0
      %1749 = vmatpush1.bf16.msra.mxu0 %v1727
      %1750 = vmatprep.subr.bf16.mxu0 0
      %1751 = vmatpush1.bf16.msra.mxu0 %v1728
      %1752 = vmatprep.subr.bf16.mxu0 0
      %1753 = vmatpush1.bf16.msra.mxu0 %v1729
      %1754 = vmatprep.subr.bf16.mxu0 0
      %1755 = vmatpush1.bf16.msra.mxu0 0
      %1756 = vmatprep.subr.bf16.mxu0 0
      %1757 = vmatpush1.bf16.msra.mxu0 0
      %1758 = vmatprep.subr.bf16.mxu0 0
      %1759 = vmatpush1.bf16.msra.mxu0 0
      %1760 = vmatprep.subr.bf16.mxu0 0
      %1761 = vmatpush1.bf16.msra.mxu0 0
      %1762 = vmatprep.subr.bf16.mxu0 0
      %1763 = vmatpush1.bf16.msra.mxu0 0
      %1764 = vmatprep.subr.bf16.mxu0 0
      %1765 = vmatpush1.bf16.msra.mxu0 0
      %1766 = vmatprep.subr.bf16.mxu0 0
      %1767 = vmatpush1.bf16.msra.mxu0 0
      %1768 = vmatprep.subr.bf16.mxu0 0
      %1769 = vmatpush1.bf16.msra.mxu0 0
      %1770 = vmatprep.mubr.bf16.mxu0 0
      %1771 = vmatmul.mubr.bf16.gmra.mrb[0].mxu0 %v1665
      %v1772 = vpop.f32.mrb[0].mxu0
      %v1773 = vadd.f32 %v1688, %v1772
      %v1774 = vpop.f32.mrb[0].mxu0
      %v1775 = vpop.f32.mrb[0].mxu0
      %v1776 = vadd.f32 %v1688, %v1775
      %v1777 = vpop.f32.mrb[0].mxu0
      %1778 = vmatprep.mubr.bf16.mxu0 0
      %1779 = vmatmul.mubr.bf16.gmra.mrb[0].mxu0 %v1666
      %v1780 = vpop.f32.mrb[0].mxu0
      %v1781 = vadd.f32 %v1688, %v1780
      %v1782 = vpop.f32.mrb[0].mxu0
      %v1783 = vpop.f32.mrb[0].mxu0
      %v1784 = vadd.f32 %v1688, %v1783
      %v1785 = vpop.f32.mrb[0].mxu0
      %1786 = vdwg.mxu0
      %1787 = vst [vmem:[%s391] sm:$0xff] %v1773
      %1788 = vst [vmem:[%s391 + $0x8] sm:$0xff] %v1776
      %1789 = vst [vmem:[%s391 + $0x10] sm:$0xff] %v1781
      %1790 = vst [vmem:[%s391 + $0x18] sm:$0xff] %v1784
      %s1791 = smul.u32 4, %s22
      %p1792 = scmp.lt.s32.totalorder %s1791, 7
      %s1793 = scalar_select %p1792, %s1791, 7
      %s1794 = smul.addr %s1793, 8
      %s1795 = scalar_lea.vmem %s11, %s1794
      // Predicated region
      $region65: #{dqn_forward.1} parent=63 // pred_check
        %p1796 = pneg %p276
      $region66: #{dqn_forward.1} parent=63 // pred_check_branch
        %1798 = sbr.rel (%p1796) target = $region68
      $region67: #{dqn_forward.1} parent=63 // pred_region
        %s1799 = smul.u32 4, %s22
      $region68: #{dqn_forward.1} parent=63 // pred_fallthru
        _
    $region64: #{dqn_forward.1} parent=5 // pred_fallthru
      _
    %p1800 = scmp.le.s32.totalorder 2, %s17
    // Predicated region
    $region69: #{dqn_forward.1} parent=5 // pred_check
      %p1801 = pneg %p1800
    $region70: #{dqn_forward.1} parent=5 // pred_check_branch
      %1803 = sbr.rel (%p1801) target = $region72
    $region71: #{dqn_forward.1} parent=5 // pred_region
      %s1804 = ssub.s32 %s17, 2
      // Predicated region
      $region73: #{dqn_forward.1} parent=71 // pred_check
        %p1805 = pneg %p282
      $region74: #{dqn_forward.1} parent=71 // pred_check_branch
        %1807 = sbr.rel (%p1805) target = $region76
      $region75: #{dqn_forward.1} parent=71 // pred_region
        %s1808 = smul.u32 4, %s23
        %p1809 = scmp.lt.s32.totalorder %s1808, 7
        %s1810 = scalar_select %p1809, %s1808, 7
        %s1811 = smul.addr %s1810, 8
        %s1812 = scalar_lea.vmem %s11, %s1811
      $region76: #{dqn_forward.1} parent=71 // pred_fallthru
        _
    $region72: #{dqn_forward.1} parent=5 // pred_fallthru
      _
  $region6: #{dqn_forward.1} parent=0 // loop_footer
    %s21 = sadd.s32 1, %s17
  $region7: #{dqn_forward.1} parent=0 // loop_footer_branch
    %16 = sbr.rel target = $region3
  $region8: #{dqn_forward.1} parent=0 // loop_exit
    _

</llo_original>
